<compile_context>
chip_gen: v5e
topology: v5e:2x2
jax: 0.10.0
libtpu: 0.0.40
codegen_flags: <defaults>
</compile_context>

<pallas_src>
import math
import functools
import numpy as np
import jax
import jax.numpy as jnp
from jax import lax
from jax.experimental import pallas as pl
from jax.experimental.pallas import tpu as pltpu

D_MODEL = 7          # real feature size
D_PAD = 128          # lane-padded feature size
D_FF = 2048
OUT_DIM = 7
LN_EPS = 1e-5


# ------------------------------ Pallas kernel ------------------------------

def transformer_kernel(x_ref, w_qkv_ref, b_qkv_ref, out_w_ref, out_b_ref,
                       ln1_w_ref, ln1_b_ref, ln2_w_ref, ln2_b_ref,
                       ff1_w_ref, ff1_b_ref, ff2_w_ref, ff2_b_ref,
                       dec_w_ref, dec_b_ref, o_ref):
    # One batch element per grid step: x is (S, D_PAD) f32, lanes >= 7 are zero.
    x = x_ref[0]
    S = x.shape[0]

    # Feature mask for LayerNorm statistics over the first D_MODEL lanes.
    lane = lax.broadcasted_iota(jnp.int32, (1, D_PAD), 1)
    feat_mask = lane < D_MODEL
    inv_d = 1.0 / D_MODEL

    def layernorm(y, w, b):
        # Padded lanes of y are exactly zero, so sum / D_MODEL == true mean.
        mu = jnp.sum(y, axis=-1, keepdims=True) * inv_d
        cent = y - mu
        var = jnp.sum(jnp.where(feat_mask, cent * cent, 0.0),
                      axis=-1, keepdims=True) * inv_d
        # Padded lanes of w and b are zero -> padded output lanes stay zero.
        return cent * lax.rsqrt(var + LN_EPS) * w + b

    # ---- fused Q/K/V projection: (S,128) @ (128,384) ----
    qkv = jnp.dot(x, w_qkv_ref[...],
                  preferred_element_type=jnp.float32) + b_qkv_ref[...]
    q = qkv[:, 0:D_PAD]
    k = qkv[:, D_PAD:2 * D_PAD]
    v = qkv[:, 2 * D_PAD:3 * D_PAD]

    # ---- single-head causal self-attention ----
    scale = 1.0 / math.sqrt(D_MODEL)
    scores = lax.dot_general(q, k, (((1,), (1,)), ((), ())),
                             preferred_element_type=jnp.float32) * scale  # (S,S)
    row = lax.broadcasted_iota(jnp.int32, (S, S), 0)
    col = lax.broadcasted_iota(jnp.int32, (S, S), 1)
    scores = jnp.where(col <= row, scores, -jnp.inf)   # in-kernel causal mask

    m = jnp.max(scores, axis=-1, keepdims=True)
    p = jnp.exp(scores - m)
    attn = p * pl.reciprocal(jnp.sum(p, axis=-1, keepdims=True), approx=True)

    ctx = jnp.dot(attn, v, preferred_element_type=jnp.float32)            # (S,128)
    attn_out = jnp.dot(ctx, out_w_ref[...],
                       preferred_element_type=jnp.float32) + out_b_ref[...]

    # ---- residual + LayerNorm 1 ----
    h = layernorm(x + attn_out, ln1_w_ref[...], ln1_b_ref[...])           # (S,128)

    # ---- feed-forward 128 -> 2048 -> 128 (bf16 MXU, f32 accumulation) ----
    f = jnp.dot(h.astype(jnp.bfloat16), ff1_w_ref[...],
                preferred_element_type=jnp.float32) + ff1_b_ref[...]      # (S,2048)
    f = jnp.maximum(f, 0.0)
    f2 = jnp.dot(f.astype(jnp.bfloat16), ff2_w_ref[...],
                 preferred_element_type=jnp.float32) + ff2_b_ref[...]     # (S,128)

    # ---- residual + LayerNorm 2 ----
    h2 = layernorm(h + f2, ln2_w_ref[...], ln2_b_ref[...])

    # ---- decoder Linear(7, 7) (padded to 128x128) ----
    out = jnp.dot(h2, dec_w_ref[...],
                  preferred_element_type=jnp.float32) + dec_b_ref[...]
    o_ref[0, :, :] = out


# ------------------------------ wrapper / glue ------------------------------

def _resident_spec(arr):
    nd = arr.ndim
    return pl.BlockSpec(arr.shape, lambda b, _nd=nd: (0,) * _nd)


@functools.partial(jax.jit, static_argnames=())
def transformer_forward(src, prepped):
    """src: (S, B, D_MODEL) f32 (PyTorch layout). Returns (S, B, OUT_DIM)."""
    S, B, D = src.shape
    x = jnp.transpose(src, (1, 0, 2)).astype(jnp.float32)         # (B, S, D)
    x = jnp.pad(x, ((0, 0), (0, 0), (0, D_PAD - D)))              # (B, S, 128)

    weights = prepped  # tuple in kernel argument order (after x)

    x_spec = pl.BlockSpec((1, S, D_PAD), lambda b: (b, 0, 0))
    in_specs = [x_spec] + [_resident_spec(w) for w in weights]
    out_spec = pl.BlockSpec((1, S, D_PAD), lambda b: (b, 0, 0))

    out = pl.pallas_call(
        transformer_kernel,
        out_shape=jax.ShapeDtypeStruct((B, S, D_PAD), jnp.float32),
        grid=(B,),
        in_specs=in_specs,
        out_specs=out_spec,
        compiler_params=pltpu.CompilerParams(
            dimension_semantics=("parallel",)),
    )(x, *weights)

    return jnp.transpose(out[..., :OUT_DIM], (1, 0, 2))           # (S, B, 7)


# ------------------------- parameter prep (one-time) -------------------------

def _pad_wT(w, rows, cols):
    """torch Linear weight (out, in) -> zero-padded (rows, cols) holding w.T."""
    wt = jnp.asarray(w, jnp.float32).T
    return jnp.zeros((rows, cols), jnp.float32).at[:wt.shape[0], :wt.shape[1]].set(wt)


def _pad_vec(b, n):
    b = jnp.asarray(b, jnp.float32)
    return jnp.zeros((1, n), jnp.float32).at[0, :b.shape[0]].set(b)


def prepare_params(p):
    d, f, dp = D_MODEL, D_FF, D_PAD
    in_w, in_b = p['in_w'], p['in_b']

    w_qkv = jnp.concatenate(
        [_pad_wT(in_w[0:d], dp, dp),
         _pad_wT(in_w[d:2 * d], dp, dp),
         _pad_wT(in_w[2 * d:3 * d], dp, dp)], axis=1)              # (128, 384)
    b_qkv = jnp.concatenate(
        [_pad_vec(in_b[0:d], dp),
         _pad_vec(in_b[d:2 * d], dp),
         _pad_vec(in_b[2 * d:3 * d], dp)], axis=1)                 # (1, 384)

    return (
        w_qkv, b_qkv,
        _pad_wT(p['out_w'], dp, dp), _pad_vec(p['out_b'], dp),
        _pad_vec(p['ln1_w'], dp), _pad_vec(p['ln1_b'], dp),
        _pad_vec(p['ln2_w'], dp), _pad_vec(p['ln2_b'], dp),
        _pad_wT(p['ff1_w'], dp, f).astype(jnp.bfloat16),           # (128, 2048) bf16
        jnp.asarray(p['ff1_b'], jnp.float32).reshape(1, f),
        _pad_wT(p['ff2_w'], f, dp).astype(jnp.bfloat16),           # (2048, 128) bf16
        _pad_vec(p['ff2_b'], dp),
        _pad_wT(p['dec_w'], dp, dp), _pad_vec(p['dec_b'], dp),
    )


# --------------------------- pure-JAX f32 reference ---------------------------

def _causal_mask(S):
    i = jnp.arange(S)[:, None]
    j = jnp.arange(S)[None, :]
    return jnp.where(j <= i, 0.0, -jnp.inf).astype(jnp.float32)


def reference_forward(src, params):
    S, B, d = src.shape
    x = jnp.transpose(src, (1, 0, 2)).astype(jnp.float32)
    x2 = x.reshape(B * S, d)
    in_w, in_b = params['in_w'], params['in_b']
    wq, wk, wv = in_w[0:d], in_w[d:2 * d], in_w[2 * d:3 * d]
    bq, bk, bv = in_b[0:d], in_b[d:2 * d], in_b[2 * d:3 * d]
    q = (x2 @ wq.T + bq).reshape(B, S, d)
    k = (x2 @ wk.T + bk).reshape(B, S, d)
    v = (x2 @ wv.T + bv).reshape(B, S, d)
    scores = jnp.einsum('bsd,btd->bst', q, k) / math.sqrt(d)
    scores = scores + _causal_mask(S)[None]
    attn = jax.nn.softmax(scores, axis=-1)
    ctx = jnp.einsum('bst,btd->bsd', attn, v).reshape(B * S, d)
    attn_out = ctx @ params['out_w'].T + params['out_b']

    def ln(y, w, b):
        mu = jnp.mean(y, -1, keepdims=True)
        var = jnp.mean((y - mu) ** 2, -1, keepdims=True)
        return (y - mu) / jnp.sqrt(var + LN_EPS) * w + b

    h = ln(x2 + attn_out, params['ln1_w'], params['ln1_b'])
    f = jnp.maximum(h @ params['ff1_w'].T + params['ff1_b'], 0.0)
    f2 = f @ params['ff2_w'].T + params['ff2_b']
    h2 = ln(h + f2, params['ln2_w'], params['ln2_b'])
    out = h2 @ params['dec_w'].T + params['dec_b']
    return jnp.transpose(out.reshape(B, S, OUT_DIM), (1, 0, 2))


# ------------------------------ param init ------------------------------

def init_params(key):
    ks = jax.random.split(key, 6)

    def u(k, shape, a):
        return jax.random.uniform(k, shape, jnp.float32, -a, a)

    d, f = D_MODEL, D_FF
    return dict(
        # MultiheadAttention in/out projections
        in_w=u(ks[0], (3 * d, d), math.sqrt(6.0 / (4 * d))),   # xavier-uniform
        in_b=jnp.zeros((3 * d,), jnp.float32),
        out_w=u(ks[1], (d, d), 1.0 / math.sqrt(d)),
        out_b=jnp.zeros((d,), jnp.float32),
        # LayerNorms (PyTorch default init)
        ln1_w=jnp.ones((d,), jnp.float32), ln1_b=jnp.zeros((d,), jnp.float32),
        ln2_w=jnp.ones((d,), jnp.float32), ln2_b=jnp.zeros((d,), jnp.float32),
        # Feed-forward
        ff1_w=u(ks[2], (f, d), 1.0 / math.sqrt(d)),
        ff1_b=u(ks[3], (f,), 1.0 / math.sqrt(d)),
        ff2_w=u(ks[4], (d, f), 1.0 / math.sqrt(f)),
        ff2_b=jnp.zeros((d,), jnp.float32),
        # Decoder: weight ~ U(-0.1, 0.1), bias zeros (matches init_weights)
        dec_w=u(ks[5], (OUT_DIM, d), 0.1),
        dec_b=jnp.zeros((OUT_DIM,), jnp.float32),
    )


if __name__ == "__main__":
    key = jax.random.PRNGKey(0)
    pkey, xkey = jax.random.split(key)
    params = init_params(pkey)
    prepped = prepare_params(params)

    S, B = 8, 2                                   # seq=8, batch=2, d_model=7
    src = jax.random.normal(xkey, (S, B, D_MODEL), jnp.float32)

    out = transformer_forward(src, prepped)
    jax.block_until_ready(out)
    assert out.shape == (S, B, OUT_DIM)

    ref = reference_forward(src, params)
    # bf16 FF matmuls + approx reciprocal -> slightly relaxed tolerance vs f32 ref
    np.testing.assert_allclose(np.asarray(out), np.asarray(ref),
                               rtol=3e-2, atol=3e-2)
    print("KERNEL_OK")
</pallas_src>

<mosaic_0001>
module attributes {stable_mosaic.version = 11 : i64} {
  func.func @transformer_kernel(%arg0: i32, %arg1: memref<1x8x128xf32, #tpu.memory_space<vmem>>, %arg2: memref<128x384xf32, #tpu.memory_space<vmem>>, %arg3: memref<1x384xf32, #tpu.memory_space<vmem>>, %arg4: memref<128x128xf32, #tpu.memory_space<vmem>>, %arg5: memref<1x128xf32, #tpu.memory_space<vmem>>, %arg6: memref<1x128xf32, #tpu.memory_space<vmem>>, %arg7: memref<1x128xf32, #tpu.memory_space<vmem>>, %arg8: memref<1x128xf32, #tpu.memory_space<vmem>>, %arg9: memref<1x128xf32, #tpu.memory_space<vmem>>, %arg10: memref<128x2048xbf16, #tpu.memory_space<vmem>>, %arg11: memref<1x2048xf32, #tpu.memory_space<vmem>>, %arg12: memref<2048x128xbf16, #tpu.memory_space<vmem>>, %arg13: memref<1x128xf32, #tpu.memory_space<vmem>>, %arg14: memref<128x128xf32, #tpu.memory_space<vmem>>, %arg15: memref<1x128xf32, #tpu.memory_space<vmem>>, %arg16: memref<1x8x128xf32, #tpu.memory_space<vmem>>) attributes {dimension_semantics = [#tpu.dimension_semantics<parallel>], iteration_bounds = array<i64: 2>, scalar_prefetch = 0 : i64, scratch_operands = 0 : i64, tpu.core_type = #tpu.core_type<tc>, window_params = [{transform_indices = @transform_0, window_bounds = array<i64: 1, 8, 128>}, {pipeline_mode = #tpu.pipeline_mode<synchronous>, transform_indices = @transform_1, window_bounds = array<i64: 128, 384>}, {pipeline_mode = #tpu.pipeline_mode<synchronous>, transform_indices = @transform_2, window_bounds = array<i64: 1, 384>}, {pipeline_mode = #tpu.pipeline_mode<synchronous>, transform_indices = @transform_3, window_bounds = array<i64: 128, 128>}, {pipeline_mode = #tpu.pipeline_mode<synchronous>, transform_indices = @transform_4, window_bounds = array<i64: 1, 128>}, {pipeline_mode = #tpu.pipeline_mode<synchronous>, transform_indices = @transform_5, window_bounds = array<i64: 1, 128>}, {pipeline_mode = #tpu.pipeline_mode<synchronous>, transform_indices = @transform_6, window_bounds = array<i64: 1, 128>}, {pipeline_mode = #tpu.pipeline_mode<synchronous>, transform_indices = @transform_7, window_bounds = array<i64: 1, 128>}, {pipeline_mode = #tpu.pipeline_mode<synchronous>, transform_indices = @transform_8, window_bounds = array<i64: 1, 128>}, {pipeline_mode = #tpu.pipeline_mode<synchronous>, transform_indices = @transform_9, window_bounds = array<i64: 128, 2048>}, {pipeline_mode = #tpu.pipeline_mode<synchronous>, transform_indices = @transform_10, window_bounds = array<i64: 1, 2048>}, {pipeline_mode = #tpu.pipeline_mode<synchronous>, transform_indices = @transform_11, window_bounds = array<i64: 2048, 128>}, {pipeline_mode = #tpu.pipeline_mode<synchronous>, transform_indices = @transform_12, window_bounds = array<i64: 1, 128>}, {pipeline_mode = #tpu.pipeline_mode<synchronous>, transform_indices = @transform_13, window_bounds = array<i64: 128, 128>}, {pipeline_mode = #tpu.pipeline_mode<synchronous>, transform_indices = @transform_14, window_bounds = array<i64: 1, 128>}, {transform_indices = @transform_15, window_bounds = array<i64: 1, 8, 128>}]} {
    %c0 = arith.constant 0 : index
    %c0_0 = arith.constant 0 : index
    %c0_1 = arith.constant 0 : index
    %0 = vector.load %arg1[%c0, %c0_0, %c0_1] : memref<1x8x128xf32, #tpu.memory_space<vmem>>, vector<1x8x128xf32>
    %1 = vector.shape_cast %0 : vector<1x8x128xf32> to vector<8x128xf32>
    %2 = tpu.iota {dimensions = array<i32: 1>} : vector<1x128xi32>
    %c7_i32 = arith.constant 7 : i32
    %3 = vector.broadcast %c7_i32 : i32 to vector<1x128xi32>
    %4 = arith.cmpi slt, %2, %3 : vector<1x128xi32>
    %c0_2 = arith.constant 0 : index
    %c0_3 = arith.constant 0 : index
    %5 = vector.load %arg2[%c0_2, %c0_3] : memref<128x384xf32, #tpu.memory_space<vmem>>, vector<128x384xf32>
    %cst = arith.constant dense<0.000000e+00> : vector<8x384xf32>
    %6 = tpu.matmul %1, %5, %cst {dimension_numbers = #tpu.dot_dimension_numbers<[1], [0], [0], [1], [0, 0, 1, 1], [], []>} : vector<8x128xf32>, vector<128x384xf32>, vector<8x384xf32> -> vector<8x384xf32>
    %c0_4 = arith.constant 0 : index
    %c0_5 = arith.constant 0 : index
    %7 = vector.load %arg3[%c0_4, %c0_5] : memref<1x384xf32, #tpu.memory_space<vmem>>, vector<1x384xf32>
    %8 = vector.broadcast %7 : vector<1x384xf32> to vector<8x384xf32>
    %9 = arith.addf %6, %8 : vector<8x384xf32>
    %10 = vector.extract_strided_slice %9 {offsets = [0, 0], sizes = [8, 128], strides = [1, 1]} : vector<8x384xf32> to vector<8x128xf32>
    %11 = vector.extract_strided_slice %9 {offsets = [0, 128], sizes = [8, 128], strides = [1, 1]} : vector<8x384xf32> to vector<8x128xf32>
    %12 = vector.extract_strided_slice %9 {offsets = [0, 256], sizes = [8, 128], strides = [1, 1]} : vector<8x384xf32> to vector<8x128xf32>
    %cst_6 = arith.constant dense<0.000000e+00> : vector<8x8xf32>
    %13 = tpu.matmul %10, %11, %cst_6 {dimension_numbers = #tpu.dot_dimension_numbers<[1], [1], [0], [0], [0, 0, 1, 0], [], []>} : vector<8x128xf32>, vector<8x128xf32>, vector<8x8xf32> -> vector<8x8xf32>
    %cst_7 = arith.constant 0.377964467 : f32
    %14 = vector.broadcast %cst_7 : f32 to vector<8x8xf32>
    %15 = arith.mulf %13, %14 : vector<8x8xf32>
    %16 = tpu.iota {dimensions = array<i32: 0>} : vector<8x8xi32>
    %17 = tpu.iota {dimensions = array<i32: 1>} : vector<8x8xi32>
    %18 = arith.cmpi sle, %17, %16 : vector<8x8xi32>
    %cst_8 = arith.constant 0xFF800000 : f32
    %19 = vector.broadcast %cst_8 : f32 to vector<8x8xf32>
    %20 = arith.select %18, %15, %19 : vector<8x8xi1>, vector<8x8xf32>
    %cst_9 = arith.constant dense<0xFF800000> : vector<8xf32>
    %21 = vector.multi_reduction <maximumf>, %20, %cst_9 [1] : vector<8x8xf32> to vector<8xf32>
    %22 = vector.shape_cast %21 : vector<8xf32> to vector<8x1xf32>
    %23 = vector.broadcast %22 : vector<8x1xf32> to vector<8x8xf32>
    %24 = arith.subf %20, %23 : vector<8x8xf32>
    %25 = math.exp %24 : vector<8x8xf32>
    %cst_10 = arith.constant dense<0.000000e+00> : vector<8xf32>
    %26 = vector.multi_reduction <add>, %25, %cst_10 [1] : vector<8x8xf32> to vector<8xf32>
    %27 = vector.shape_cast %26 : vector<8xf32> to vector<8x1xf32>
    %28 = tpu.reciprocal %27 {approx = true} : vector<8x1xf32> -> vector<8x1xf32>
    %29 = vector.broadcast %28 : vector<8x1xf32> to vector<8x8xf32>
    %30 = arith.mulf %25, %29 : vector<8x8xf32>
    %cst_11 = arith.constant dense<0.000000e+00> : vector<8x128xf32>
    %31 = tpu.matmul %30, %12, %cst_11 {dimension_numbers = #tpu.dot_dimension_numbers<[1], [0], [0], [1], [0, 0, 1, 1], [], []>} : vector<8x8xf32>, vector<8x128xf32>, vector<8x128xf32> -> vector<8x128xf32>
    %c0_12 = arith.constant 0 : index
    %c0_13 = arith.constant 0 : index
    %32 = vector.load %arg4[%c0_12, %c0_13] : memref<128x128xf32, #tpu.memory_space<vmem>>, vector<128x128xf32>
    %cst_14 = arith.constant dense<0.000000e+00> : vector<8x128xf32>
    %33 = tpu.matmul %31, %32, %cst_14 {dimension_numbers = #tpu.dot_dimension_numbers<[1], [0], [0], [1], [0, 0, 1, 1], [], []>} : vector<8x128xf32>, vector<128x128xf32>, vector<8x128xf32> -> vector<8x128xf32>
    %c0_15 = arith.constant 0 : index
    %c0_16 = arith.constant 0 : index
    %34 = vector.load %arg5[%c0_15, %c0_16] : memref<1x128xf32, #tpu.memory_space<vmem>>, vector<1x128xf32>
    %35 = vector.broadcast %34 : vector<1x128xf32> to vector<8x128xf32>
    %36 = arith.addf %33, %35 : vector<8x128xf32>
    %37 = arith.addf %1, %36 : vector<8x128xf32>
    %c0_17 = arith.constant 0 : index
    %c0_18 = arith.constant 0 : index
    %38 = vector.load %arg6[%c0_17, %c0_18] : memref<1x128xf32, #tpu.memory_space<vmem>>, vector<1x128xf32>
    %c0_19 = arith.constant 0 : index
    %c0_20 = arith.constant 0 : index
    %39 = vector.load %arg7[%c0_19, %c0_20] : memref<1x128xf32, #tpu.memory_space<vmem>>, vector<1x128xf32>
    %cst_21 = arith.constant dense<0.000000e+00> : vector<8xf32>
    %40 = vector.multi_reduction <add>, %37, %cst_21 [1] : vector<8x128xf32> to vector<8xf32>
    %41 = vector.shape_cast %40 : vector<8xf32> to vector<8x1xf32>
    %cst_22 = arith.constant 0.142857149 : f32
    %42 = vector.broadcast %cst_22 : f32 to vector<8x1xf32>
    %43 = arith.mulf %41, %42 : vector<8x1xf32>
    %44 = vector.broadcast %43 : vector<8x1xf32> to vector<8x128xf32>
    %45 = arith.subf %37, %44 : vector<8x128xf32>
    %46 = arith.mulf %45, %45 : vector<8x128xf32>
    %cst_23 = arith.constant 0.000000e+00 : f32
    %47 = vector.shape_cast %4 : vector<1x128xi1> to vector<1x128xi1>
    %48 = vector.broadcast %47 : vector<1x128xi1> to vector<8x128xi1>
    %49 = vector.broadcast %cst_23 : f32 to vector<8x128xf32>
    %50 = arith.select %48, %46, %49 : vector<8x128xi1>, vector<8x128xf32>
    %cst_24 = arith.constant dense<0.000000e+00> : vector<8xf32>
    %51 = vector.multi_reduction <add>, %50, %cst_24 [1] : vector<8x128xf32> to vector<8xf32>
    %52 = vector.shape_cast %51 : vector<8xf32> to vector<8x1xf32>
    %cst_25 = arith.constant 0.142857149 : f32
    %53 = vector.broadcast %cst_25 : f32 to vector<8x1xf32>
    %54 = arith.mulf %52, %53 : vector<8x1xf32>
    %cst_26 = arith.constant 9.99999974E-6 : f32
    %55 = vector.broadcast %cst_26 : f32 to vector<8x1xf32>
    %56 = arith.addf %54, %55 : vector<8x1xf32>
    %57 = math.rsqrt %56 : vector<8x1xf32>
    %58 = vector.broadcast %57 : vector<8x1xf32> to vector<8x128xf32>
    %59 = arith.mulf %45, %58 : vector<8x128xf32>
    %60 = vector.broadcast %38 : vector<1x128xf32> to vector<8x128xf32>
    %61 = arith.mulf %59, %60 : vector<8x128xf32>
    %62 = vector.broadcast %39 : vector<1x128xf32> to vector<8x128xf32>
    %63 = arith.addf %61, %62 : vector<8x128xf32>
    %64 = arith.truncf %63 : vector<8x128xf32> to vector<8x128xbf16>
    %c0_27 = arith.constant 0 : index
    %c0_28 = arith.constant 0 : index
    %65 = vector.load %arg10[%c0_27, %c0_28] : memref<128x2048xbf16, #tpu.memory_space<vmem>>, vector<128x2048xbf16>
    %cst_29 = arith.constant dense<0.000000e+00> : vector<8x2048xf32>
    %66 = tpu.matmul %64, %65, %cst_29 {dimension_numbers = #tpu.dot_dimension_numbers<[1], [0], [0], [1], [0, 0, 1, 1], [], []>} : vector<8x128xbf16>, vector<128x2048xbf16>, vector<8x2048xf32> -> vector<8x2048xf32>
    %c0_30 = arith.constant 0 : index
    %c0_31 = arith.constant 0 : index
    %67 = vector.load %arg11[%c0_30, %c0_31] : memref<1x2048xf32, #tpu.memory_space<vmem>>, vector<1x2048xf32>
    %68 = vector.broadcast %67 : vector<1x2048xf32> to vector<8x2048xf32>
    %69 = arith.addf %66, %68 : vector<8x2048xf32>
    %cst_32 = arith.constant 0.000000e+00 : f32
    %70 = vector.broadcast %cst_32 : f32 to vector<8x2048xf32>
    %71 = arith.maximumf %69, %70 : vector<8x2048xf32>
    %72 = arith.truncf %71 : vector<8x2048xf32> to vector<8x2048xbf16>
    %c0_33 = arith.constant 0 : index
    %c0_34 = arith.constant 0 : index
    %73 = vector.load %arg12[%c0_33, %c0_34] : memref<2048x128xbf16, #tpu.memory_space<vmem>>, vector<2048x128xbf16>
    %cst_35 = arith.constant dense<0.000000e+00> : vector<8x128xf32>
    %74 = tpu.matmul %72, %73, %cst_35 {dimension_numbers = #tpu.dot_dimension_numbers<[1], [0], [0], [1], [0, 0, 1, 1], [], []>} : vector<8x2048xbf16>, vector<2048x128xbf16>, vector<8x128xf32> -> vector<8x128xf32>
    %c0_36 = arith.constant 0 : index
    %c0_37 = arith.constant 0 : index
    %75 = vector.load %arg13[%c0_36, %c0_37] : memref<1x128xf32, #tpu.memory_space<vmem>>, vector<1x128xf32>
    %76 = vector.broadcast %75 : vector<1x128xf32> to vector<8x128xf32>
    %77 = arith.addf %74, %76 : vector<8x128xf32>
    %78 = arith.addf %63, %77 : vector<8x128xf32>
    %c0_38 = arith.constant 0 : index
    %c0_39 = arith.constant 0 : index
    %79 = vector.load %arg8[%c0_38, %c0_39] : memref<1x128xf32, #tpu.memory_space<vmem>>, vector<1x128xf32>
    %c0_40 = arith.constant 0 : index
    %c0_41 = arith.constant 0 : index
    %80 = vector.load %arg9[%c0_40, %c0_41] : memref<1x128xf32, #tpu.memory_space<vmem>>, vector<1x128xf32>
    %cst_42 = arith.constant dense<0.000000e+00> : vector<8xf32>
    %81 = vector.multi_reduction <add>, %78, %cst_42 [1] : vector<8x128xf32> to vector<8xf32>
    %82 = vector.shape_cast %81 : vector<8xf32> to vector<8x1xf32>
    %cst_43 = arith.constant 0.142857149 : f32
    %83 = vector.broadcast %cst_43 : f32 to vector<8x1xf32>
    %84 = arith.mulf %82, %83 : vector<8x1xf32>
    %85 = vector.broadcast %84 : vector<8x1xf32> to vector<8x128xf32>
    %86 = arith.subf %78, %85 : vector<8x128xf32>
    %87 = arith.mulf %86, %86 : vector<8x128xf32>
    %cst_44 = arith.constant 0.000000e+00 : f32
    %88 = vector.shape_cast %4 : vector<1x128xi1> to vector<1x128xi1>
    %89 = vector.broadcast %88 : vector<1x128xi1> to vector<8x128xi1>
    %90 = vector.broadcast %cst_44 : f32 to vector<8x128xf32>
    %91 = arith.select %89, %87, %90 : vector<8x128xi1>, vector<8x128xf32>
    %cst_45 = arith.constant dense<0.000000e+00> : vector<8xf32>
    %92 = vector.multi_reduction <add>, %91, %cst_45 [1] : vector<8x128xf32> to vector<8xf32>
    %93 = vector.shape_cast %92 : vector<8xf32> to vector<8x1xf32>
    %cst_46 = arith.constant 0.142857149 : f32
    %94 = vector.broadcast %cst_46 : f32 to vector<8x1xf32>
    %95 = arith.mulf %93, %94 : vector<8x1xf32>
    %cst_47 = arith.constant 9.99999974E-6 : f32
    %96 = vector.broadcast %cst_47 : f32 to vector<8x1xf32>
    %97 = arith.addf %95, %96 : vector<8x1xf32>
    %98 = math.rsqrt %97 : vector<8x1xf32>
    %99 = vector.broadcast %98 : vector<8x1xf32> to vector<8x128xf32>
    %100 = arith.mulf %86, %99 : vector<8x128xf32>
    %101 = vector.broadcast %79 : vector<1x128xf32> to vector<8x128xf32>
    %102 = arith.mulf %100, %101 : vector<8x128xf32>
    %103 = vector.broadcast %80 : vector<1x128xf32> to vector<8x128xf32>
    %104 = arith.addf %102, %103 : vector<8x128xf32>
    %c0_48 = arith.constant 0 : index
    %c0_49 = arith.constant 0 : index
    %105 = vector.load %arg14[%c0_48, %c0_49] : memref<128x128xf32, #tpu.memory_space<vmem>>, vector<128x128xf32>
    %cst_50 = arith.constant dense<0.000000e+00> : vector<8x128xf32>
    %106 = tpu.matmul %104, %105, %cst_50 {dimension_numbers = #tpu.dot_dimension_numbers<[1], [0], [0], [1], [0, 0, 1, 1], [], []>} : vector<8x128xf32>, vector<128x128xf32>, vector<8x128xf32> -> vector<8x128xf32>
    %c0_51 = arith.constant 0 : index
    %c0_52 = arith.constant 0 : index
    %107 = vector.load %arg15[%c0_51, %c0_52] : memref<1x128xf32, #tpu.memory_space<vmem>>, vector<1x128xf32>
    %108 = vector.broadcast %107 : vector<1x128xf32> to vector<8x128xf32>
    %109 = arith.addf %106, %108 : vector<8x128xf32>
    %c0_53 = arith.constant 0 : index
    %c0_54 = arith.constant 0 : index
    %c0_55 = arith.constant 0 : index
    %110 = vector.load %arg16[%c0_53, %c0_54, %c0_55] : memref<1x8x128xf32, #tpu.memory_space<vmem>>, vector<1x8x128xf32>
    %111 = vector.shape_cast %110 : vector<1x8x128xf32> to vector<8x128xf32>
    %112 = vector.shape_cast %109 : vector<8x128xf32> to vector<1x8x128xf32>
    tpu.vector_store %arg16[%c0_53, %c0_54, %c0_55], %112 {strides = array<i32>} : memref<1x8x128xf32, #tpu.memory_space<vmem>>, vector<1x8x128xf32>,
    return
  }
  func.func @transform_0(%arg0: i32) -> (i32, i32, i32) {
    %c0_i32 = arith.constant 0 : i32
    %c0_i32_0 = arith.constant 0 : i32
    %c0_i32_1 = arith.constant 0 : i32
    return %arg0, %c0_i32, %c0_i32_0 : i32, i32, i32
  }
  func.func @transform_1(%arg0: i32) -> (i32, i32) {
    %c0_i32 = arith.constant 0 : i32
    %c0_i32_0 = arith.constant 0 : i32
    %c0_i32_1 = arith.constant 0 : i32
    return %c0_i32, %c0_i32_0 : i32, i32
  }
  func.func @transform_2(%arg0: i32) -> (i32, i32) {
    %c0_i32 = arith.constant 0 : i32
    %c0_i32_0 = arith.constant 0 : i32
    %c0_i32_1 = arith.constant 0 : i32
    return %c0_i32, %c0_i32_0 : i32, i32
  }
  func.func @transform_3(%arg0: i32) -> (i32, i32) {
    %c0_i32 = arith.constant 0 : i32
    %c0_i32_0 = arith.constant 0 : i32
    %c0_i32_1 = arith.constant 0 : i32
    return %c0_i32, %c0_i32_0 : i32, i32
  }
  func.func @transform_4(%arg0: i32) -> (i32, i32) {
    %c0_i32 = arith.constant 0 : i32
    %c0_i32_0 = arith.constant 0 : i32
    %c0_i32_1 = arith.constant 0 : i32
    return %c0_i32, %c0_i32_0 : i32, i32
  }
  func.func @transform_5(%arg0: i32) -> (i32, i32) {
    %c0_i32 = arith.constant 0 : i32
    %c0_i32_0 = arith.constant 0 : i32
    %c0_i32_1 = arith.constant 0 : i32
    return %c0_i32, %c0_i32_0 : i32, i32
  }
  func.func @transform_6(%arg0: i32) -> (i32, i32) {
    %c0_i32 = arith.constant 0 : i32
    %c0_i32_0 = arith.constant 0 : i32
    %c0_i32_1 = arith.constant 0 : i32
    return %c0_i32, %c0_i32_0 : i32, i32
  }
  func.func @transform_7(%arg0: i32) -> (i32, i32) {
    %c0_i32 = arith.constant 0 : i32
    %c0_i32_0 = arith.constant 0 : i32
    %c0_i32_1 = arith.constant 0 : i32
    return %c0_i32, %c0_i32_0 : i32, i32
  }
  func.func @transform_8(%arg0: i32) -> (i32, i32) {
    %c0_i32 = arith.constant 0 : i32
    %c0_i32_0 = arith.constant 0 : i32
    %c0_i32_1 = arith.constant 0 : i32
    return %c0_i32, %c0_i32_0 : i32, i32
  }
  func.func @transform_9(%arg0: i32) -> (i32, i32) {
    %c0_i32 = arith.constant 0 : i32
    %c0_i32_0 = arith.constant 0 : i32
    %c0_i32_1 = arith.constant 0 : i32
    return %c0_i32, %c0_i32_0 : i32, i32
  }
  func.func @transform_10(%arg0: i32) -> (i32, i32) {
    %c0_i32 = arith.constant 0 : i32
    %c0_i32_0 = arith.constant 0 : i32
    %c0_i32_1 = arith.constant 0 : i32
    return %c0_i32, %c0_i32_0 : i32, i32
  }
  func.func @transform_11(%arg0: i32) -> (i32, i32) {
    %c0_i32 = arith.constant 0 : i32
    %c0_i32_0 = arith.constant 0 : i32
    %c0_i32_1 = arith.constant 0 : i32
    return %c0_i32, %c0_i32_0 : i32, i32
  }
  func.func @transform_12(%arg0: i32) -> (i32, i32) {
    %c0_i32 = arith.constant 0 : i32
    %c0_i32_0 = arith.constant 0 : i32
    %c0_i32_1 = arith.constant 0 : i32
    return %c0_i32, %c0_i32_0 : i32, i32
  }
  func.func @transform_13(%arg0: i32) -> (i32, i32) {
    %c0_i32 = arith.constant 0 : i32
    %c0_i32_0 = arith.constant 0 : i32
    %c0_i32_1 = arith.constant 0 : i32
    return %c0_i32, %c0_i32_0 : i32, i32
  }
  func.func @transform_14(%arg0: i32) -> (i32, i32) {
    %c0_i32 = arith.constant 0 : i32
    %c0_i32_0 = arith.constant 0 : i32
    %c0_i32_1 = arith.constant 0 : i32
    return %c0_i32, %c0_i32_0 : i32, i32
  }
  func.func @transform_15(%arg0: i32) -> (i32, i32, i32) {
    %c0_i32 = arith.constant 0 : i32
    %c0_i32_0 = arith.constant 0 : i32
    %c0_i32_1 = arith.constant 0 : i32
    return %arg0, %c0_i32, %c0_i32_0 : i32, i32, i32
  }
}

</mosaic_0001>

<llo_original>
// kernel: transformer_forward.1
$region0: #{transformer_forward.1}
  #allocation0 [shape = 'u32[]', space=smem, size = 0x4, offset = 0x4, fixed_abs, tag = 'smem constant byte address 0x4 - core index']
  #allocation1 [shape = 'u32[72,128]{1,0:T(1,128)}', space=vmem, size = 0x9000, scoped, tag = 'internal scratch']
  %s0 = inlined_call_operand.vmem [shape: f32[2,8,128], index: 0, kind: input, shape index: {}]
  %s1 = inlined_call_operand.hbm [shape: f32[128,384], index: 1, kind: input, shape index: {}]
  %s2 = inlined_call_operand.vmem [shape: f32[1,384], index: 2, kind: input, shape index: {}]
  %s3 = inlined_call_operand.hbm [shape: f32[128,128], index: 3, kind: input, shape index: {}]
  %s4 = inlined_call_operand.vmem [shape: f32[1,128], index: 4, kind: input, shape index: {}]
  %s5 = inlined_call_operand.vmem [shape: f32[1,128], index: 5, kind: input, shape index: {}]
  %s6 = inlined_call_operand.vmem [shape: f32[1,128], index: 6, kind: input, shape index: {}]
  %s7 = inlined_call_operand.vmem [shape: f32[1,128], index: 7, kind: input, shape index: {}]
  %s8 = inlined_call_operand.vmem [shape: f32[1,128], index: 8, kind: input, shape index: {}]
  %s9 = inlined_call_operand.hbm [shape: bf16[128,2048], index: 9, kind: input, shape index: {}]
  %s10 = inlined_call_operand.vmem [shape: f32[1,2048], index: 10, kind: input, shape index: {}]
  %s11 = inlined_call_operand.hbm [shape: bf16[2048,128], index: 11, kind: input, shape index: {}]
  %s12 = inlined_call_operand.vmem [shape: f32[1,128], index: 12, kind: input, shape index: {}]
  %s13 = inlined_call_operand.hbm [shape: f32[128,128], index: 13, kind: input, shape index: {}]
  %s14 = inlined_call_operand.vmem [shape: f32[1,128], index: 14, kind: input, shape index: {}]
  %s15 = inlined_call_operand.vmem [shape: f32[2,8,128], index: 15, kind: output, shape index: {}]
  %s16 = sld [smem:[#allocation0]]
  $region113: #{transformer_forward.1} parent=0
    _
  %s18 = ssub.s32 1, %s16
  %s19 = scalar_select 0, %s18, %s16
  $region1: #{transformer_forward.1} parent=0
    #allocation2 [shape = 'u8[196608]{0}', space=vmem, size = 0x30000, scoped, tag = 'input window, operand 1, single buffered']
    #allocation3 [shape = 's32[2]{0}', space=sflag, size = 0x8, scoped, tag = 'scoped memory for transformer_forward.1']
    #allocation4 [shape = 'u8[65536]{0}', space=vmem, size = 0x10000, scoped, tag = 'input window, operand 3, single buffered']
    #allocation5 [shape = 's32[1]{0}', space=sflag, size = 0x4, scoped, tag = 'scoped memory for transformer_forward.1']
    #allocation6 [shape = 'u8[524288]{0}', space=vmem, size = 0x80000, scoped, tag = 'input window, operand 9, single buffered']
    #allocation7 [shape = 'u8[524288]{0}', space=vmem, size = 0x80000, scoped, tag = 'input window, operand 11, single buffered']
    #allocation8 [shape = 's32[1]{0}', space=sflag, size = 0x4, scoped, tag = 'scoped memory for transformer_forward.1']
    #allocation9 [shape = 'u8[65536]{0}', space=vmem, size = 0x10000, scoped, tag = 'input window, operand 13, single buffered']
    %20 = vsyncpa [#allocation3], 0
    %21 = vsyncpa [#allocation5], 0
    %22 = vsyncpa [#allocation8], 0
    loop: start=0, step=1, limit=4
    $region2: #{transformer_forward.1} parent=1 // loop_pre_header
      _
    $region3: #{transformer_forward.1} parent=1 // loop_header
      %s24 = sphi 0, %s28
      %p25 = scmp.ge.s32.totalorder %s24, 4
      %s34 = sphi 0, %s36
      %s37 = sphi 0, %s34
      %s38 = sphi 0, %s37
      %s54 = sphi 0, %s38
      %s58 = sphi 0, %s58
      %s60 = sphi 0, %s58
      %s61 = sphi 0, %s60
      %s75 = sphi 0, %s61
      %s79 = sphi 0, %s79
      %s81 = sphi 0, %s79
      %s82 = sphi 0, %s81
      %s96 = sphi 0, %s82
      %s100 = sphi 0, %s100
      %s102 = sphi 0, %s100
      %s103 = sphi 0, %s102
      %s117 = sphi 0, %s103
      %s121 = sphi 0, %s121
      %s123 = sphi 0, %s121
      %s124 = sphi 0, %s123
      %s138 = sphi 0, %s124
      %s142 = sphi 0, %s142
      %s144 = sphi 0, %s142
      %s145 = sphi 0, %s144
      %s159 = sphi 0, %s145
      %s163 = sphi 0, %s163
      %s165 = sphi 0, %s163
      %s166 = sphi 0, %s165
      %s180 = sphi 0, %s166
      %s184 = sphi 0, %s184
      %s186 = sphi 0, %s184
      %s187 = sphi 0, %s186
      %s201 = sphi 0, %s187
      %s205 = sphi 0, %s205
      %s207 = sphi 0, %s205
      %s208 = sphi 0, %s207
      %s222 = sphi 0, %s208
      %s226 = sphi 0, %s226
      %s228 = sphi 0, %s226
      %s229 = sphi 0, %s228
      %s243 = sphi 0, %s229
      %s247 = sphi 0, %s247
      %s249 = sphi 0, %s247
      %s250 = sphi 0, %s249
      %s264 = sphi 0, %s250
      %s268 = sphi 0, %s268
      %s270 = sphi 0, %s268
      %s271 = sphi 0, %s270
      %s285 = sphi 0, %s271
      %s289 = sphi 0, %s289
      %s291 = sphi 0, %s289
      %s292 = sphi 0, %s291
      %s306 = sphi 0, %s292
      %s310 = sphi 0, %s310
      %s312 = sphi 0, %s310
      %s313 = sphi 0, %s312
      %s327 = sphi 0, %s313
      %s331 = sphi 0, %s331
      %s333 = sphi 0, %s331
      %s334 = sphi 0, %s333
      %s348 = sphi 0, %s334
      %s354 = sphi 0, %s356
      %s357 = sphi 0, %s354
      %s358 = sphi 0, %s357
      %s374 = sphi 0, %s358
    $region4: #{transformer_forward.1} parent=1 // loop_header_branch
      %27 = sbr.rel (%p25) target = $region8
    $region5: #{transformer_forward.1} parent=1 // loop_body
      %s29 = ssub.s32 %s24, 1
      %s30 = ssub.s32 %s24, 2
      %s31 = sadd.s32 %s24, 1
      %s32 = ssub.s32 %s24, %s31
      %p33 = scmp.eq.s32.totalorder %s32, 0
      %s35 = sadd.s32 %s34, 1
      %s36 = scalar_select %p33, %s34, %s35
      %p39 = pneg %p33
      %p40 = scmp.eq.s32.totalorder %s24, 1
      %p41 = por %p39, %p40
      %p42 = scmp.ne.s32.totalorder %s34, %s37
      %p43 = scmp.eq.s32.totalorder %s24, 0
      %p44 = por %p42, %p43
      %p45 = scmp.ne.s32.totalorder %s34, %s37
      %p46 = scmp.eq.s32.totalorder %s29, 1
      %p47 = por %p45, %p46
      %p48 = scmp.ne.s32.totalorder %s37, %s38
      %p49 = scmp.eq.s32.totalorder %s29, 0
      %p50 = por %p48, %p49
      %p51 = scmp.ne.s32.totalorder %s37, %s38
      %p52 = scmp.eq.s32.totalorder %s30, 1
      %p53 = por %p51, %p52
      %p55 = scmp.ne.s32.totalorder %s38, %s54
      %p56 = scmp.eq.s32.totalorder %s30, 0
      %p57 = por %p55, %p56
      %s59 = sadd.s32 %s58, 1
      %p62 = scmp.eq.s32.totalorder %s24, 1
      %p63 = scmp.ne.s32.totalorder %s58, %s60
      %p64 = scmp.eq.s32.totalorder %s24, 0
      %p65 = por %p63, %p64
      %p66 = scmp.ne.s32.totalorder %s58, %s60
      %p67 = scmp.eq.s32.totalorder %s29, 1
      %p68 = por %p66, %p67
      %p69 = scmp.ne.s32.totalorder %s60, %s61
      %p70 = scmp.eq.s32.totalorder %s29, 0
      %p71 = por %p69, %p70
      %p72 = scmp.ne.s32.totalorder %s60, %s61
      %p73 = scmp.eq.s32.totalorder %s30, 1
      %p74 = por %p72, %p73
      %p76 = scmp.ne.s32.totalorder %s61, %s75
      %p77 = scmp.eq.s32.totalorder %s30, 0
      %p78 = por %p76, %p77
      %s80 = sadd.s32 %s79, 1
      %p83 = scmp.eq.s32.totalorder %s24, 1
      %p84 = scmp.ne.s32.totalorder %s79, %s81
      %p85 = scmp.eq.s32.totalorder %s24, 0
      %p86 = por %p84, %p85
      %p87 = scmp.ne.s32.totalorder %s79, %s81
      %p88 = scmp.eq.s32.totalorder %s29, 1
      %p89 = por %p87, %p88
      %p90 = scmp.ne.s32.totalorder %s81, %s82
      %p91 = scmp.eq.s32.totalorder %s29, 0
      %p92 = por %p90, %p91
      %p93 = scmp.ne.s32.totalorder %s81, %s82
      %p94 = scmp.eq.s32.totalorder %s30, 1
      %p95 = por %p93, %p94
      %p97 = scmp.ne.s32.totalorder %s82, %s96
      %p98 = scmp.eq.s32.totalorder %s30, 0
      %p99 = por %p97, %p98
      %s101 = sadd.s32 %s100, 1
      %p104 = scmp.eq.s32.totalorder %s24, 1
      %p105 = scmp.ne.s32.totalorder %s100, %s102
      %p106 = scmp.eq.s32.totalorder %s24, 0
      %p107 = por %p105, %p106
      %p108 = scmp.ne.s32.totalorder %s100, %s102
      %p109 = scmp.eq.s32.totalorder %s29, 1
      %p110 = por %p108, %p109
      %p111 = scmp.ne.s32.totalorder %s102, %s103
      %p112 = scmp.eq.s32.totalorder %s29, 0
      %p113 = por %p111, %p112
      %p114 = scmp.ne.s32.totalorder %s102, %s103
      %p115 = scmp.eq.s32.totalorder %s30, 1
      %p116 = por %p114, %p115
      %p118 = scmp.ne.s32.totalorder %s103, %s117
      %p119 = scmp.eq.s32.totalorder %s30, 0
      %p120 = por %p118, %p119
      %s122 = sadd.s32 %s121, 1
      %p125 = scmp.eq.s32.totalorder %s24, 1
      %p126 = scmp.ne.s32.totalorder %s121, %s123
      %p127 = scmp.eq.s32.totalorder %s24, 0
      %p128 = por %p126, %p127
      %p129 = scmp.ne.s32.totalorder %s121, %s123
      %p130 = scmp.eq.s32.totalorder %s29, 1
      %p131 = por %p129, %p130
      %p132 = scmp.ne.s32.totalorder %s123, %s124
      %p133 = scmp.eq.s32.totalorder %s29, 0
      %p134 = por %p132, %p133
      %p135 = scmp.ne.s32.totalorder %s123, %s124
      %p136 = scmp.eq.s32.totalorder %s30, 1
      %p137 = por %p135, %p136
      %p139 = scmp.ne.s32.totalorder %s124, %s138
      %p140 = scmp.eq.s32.totalorder %s30, 0
      %p141 = por %p139, %p140
      %s143 = sadd.s32 %s142, 1
      %p146 = scmp.eq.s32.totalorder %s24, 1
      %p147 = scmp.ne.s32.totalorder %s142, %s144
      %p148 = scmp.eq.s32.totalorder %s24, 0
      %p149 = por %p147, %p148
      %p150 = scmp.ne.s32.totalorder %s142, %s144
      %p151 = scmp.eq.s32.totalorder %s29, 1
      %p152 = por %p150, %p151
      %p153 = scmp.ne.s32.totalorder %s144, %s145
      %p154 = scmp.eq.s32.totalorder %s29, 0
      %p155 = por %p153, %p154
      %p156 = scmp.ne.s32.totalorder %s144, %s145
      %p157 = scmp.eq.s32.totalorder %s30, 1
      %p158 = por %p156, %p157
      %p160 = scmp.ne.s32.totalorder %s145, %s159
      %p161 = scmp.eq.s32.totalorder %s30, 0
      %p162 = por %p160, %p161
      %s164 = sadd.s32 %s163, 1
      %p167 = scmp.eq.s32.totalorder %s24, 1
      %p168 = scmp.ne.s32.totalorder %s163, %s165
      %p169 = scmp.eq.s32.totalorder %s24, 0
      %p170 = por %p168, %p169
      %p171 = scmp.ne.s32.totalorder %s163, %s165
      %p172 = scmp.eq.s32.totalorder %s29, 1
      %p173 = por %p171, %p172
      %p174 = scmp.ne.s32.totalorder %s165, %s166
      %p175 = scmp.eq.s32.totalorder %s29, 0
      %p176 = por %p174, %p175
      %p177 = scmp.ne.s32.totalorder %s165, %s166
      %p178 = scmp.eq.s32.totalorder %s30, 1
      %p179 = por %p177, %p178
      %p181 = scmp.ne.s32.totalorder %s166, %s180
      %p182 = scmp.eq.s32.totalorder %s30, 0
      %p183 = por %p181, %p182
      %s185 = sadd.s32 %s184, 1
      %p188 = scmp.eq.s32.totalorder %s24, 1
      %p189 = scmp.ne.s32.totalorder %s184, %s186
      %p190 = scmp.eq.s32.totalorder %s24, 0
      %p191 = por %p189, %p190
      %p192 = scmp.ne.s32.totalorder %s184, %s186
      %p193 = scmp.eq.s32.totalorder %s29, 1
      %p194 = por %p192, %p193
      %p195 = scmp.ne.s32.totalorder %s186, %s187
      %p196 = scmp.eq.s32.totalorder %s29, 0
      %p197 = por %p195, %p196
      %p198 = scmp.ne.s32.totalorder %s186, %s187
      %p199 = scmp.eq.s32.totalorder %s30, 1
      %p200 = por %p198, %p199
      %p202 = scmp.ne.s32.totalorder %s187, %s201
      %p203 = scmp.eq.s32.totalorder %s30, 0
      %p204 = por %p202, %p203
      %s206 = sadd.s32 %s205, 1
      %p209 = scmp.eq.s32.totalorder %s24, 1
      %p210 = scmp.ne.s32.totalorder %s205, %s207
      %p211 = scmp.eq.s32.totalorder %s24, 0
      %p212 = por %p210, %p211
      %p213 = scmp.ne.s32.totalorder %s205, %s207
      %p214 = scmp.eq.s32.totalorder %s29, 1
      %p215 = por %p213, %p214
      %p216 = scmp.ne.s32.totalorder %s207, %s208
      %p217 = scmp.eq.s32.totalorder %s29, 0
      %p218 = por %p216, %p217
      %p219 = scmp.ne.s32.totalorder %s207, %s208
      %p220 = scmp.eq.s32.totalorder %s30, 1
      %p221 = por %p219, %p220
      %p223 = scmp.ne.s32.totalorder %s208, %s222
      %p224 = scmp.eq.s32.totalorder %s30, 0
      %p225 = por %p223, %p224
      %s227 = sadd.s32 %s226, 1
      %p230 = scmp.eq.s32.totalorder %s24, 1
      %p231 = scmp.ne.s32.totalorder %s226, %s228
      %p232 = scmp.eq.s32.totalorder %s24, 0
      %p233 = por %p231, %p232
      %p234 = scmp.ne.s32.totalorder %s226, %s228
      %p235 = scmp.eq.s32.totalorder %s29, 1
      %p236 = por %p234, %p235
      %p237 = scmp.ne.s32.totalorder %s228, %s229
      %p238 = scmp.eq.s32.totalorder %s29, 0
      %p239 = por %p237, %p238
      %p240 = scmp.ne.s32.totalorder %s228, %s229
      %p241 = scmp.eq.s32.totalorder %s30, 1
      %p242 = por %p240, %p241
      %p244 = scmp.ne.s32.totalorder %s229, %s243
      %p245 = scmp.eq.s32.totalorder %s30, 0
      %p246 = por %p244, %p245
      %s248 = sadd.s32 %s247, 1
      %p251 = scmp.eq.s32.totalorder %s24, 1
      %p252 = scmp.ne.s32.totalorder %s247, %s249
      %p253 = scmp.eq.s32.totalorder %s24, 0
      %p254 = por %p252, %p253
      %p255 = scmp.ne.s32.totalorder %s247, %s249
      %p256 = scmp.eq.s32.totalorder %s29, 1
      %p257 = por %p255, %p256
      %p258 = scmp.ne.s32.totalorder %s249, %s250
      %p259 = scmp.eq.s32.totalorder %s29, 0
      %p260 = por %p258, %p259
      %p261 = scmp.ne.s32.totalorder %s249, %s250
      %p262 = scmp.eq.s32.totalorder %s30, 1
      %p263 = por %p261, %p262
      %p265 = scmp.ne.s32.totalorder %s250, %s264
      %p266 = scmp.eq.s32.totalorder %s30, 0
      %p267 = por %p265, %p266
      %s269 = sadd.s32 %s268, 1
      %p272 = scmp.eq.s32.totalorder %s24, 1
      %p273 = scmp.ne.s32.totalorder %s268, %s270
      %p274 = scmp.eq.s32.totalorder %s24, 0
      %p275 = por %p273, %p274
      %p276 = scmp.ne.s32.totalorder %s268, %s270
      %p277 = scmp.eq.s32.totalorder %s29, 1
      %p278 = por %p276, %p277
      %p279 = scmp.ne.s32.totalorder %s270, %s271
      %p280 = scmp.eq.s32.totalorder %s29, 0
      %p281 = por %p279, %p280
      %p282 = scmp.ne.s32.totalorder %s270, %s271
      %p283 = scmp.eq.s32.totalorder %s30, 1
      %p284 = por %p282, %p283
      %p286 = scmp.ne.s32.totalorder %s271, %s285
      %p287 = scmp.eq.s32.totalorder %s30, 0
      %p288 = por %p286, %p287
      %s290 = sadd.s32 %s289, 1
      %p293 = scmp.eq.s32.totalorder %s24, 1
      %p294 = scmp.ne.s32.totalorder %s289, %s291
      %p295 = scmp.eq.s32.totalorder %s24, 0
      %p296 = por %p294, %p295
      %p297 = scmp.ne.s32.totalorder %s289, %s291
      %p298 = scmp.eq.s32.totalorder %s29, 1
      %p299 = por %p297, %p298
      %p300 = scmp.ne.s32.totalorder %s291, %s292
      %p301 = scmp.eq.s32.totalorder %s29, 0
      %p302 = por %p300, %p301
      %p303 = scmp.ne.s32.totalorder %s291, %s292
      %p304 = scmp.eq.s32.totalorder %s30, 1
      %p305 = por %p303, %p304
      %p307 = scmp.ne.s32.totalorder %s292, %s306
      %p308 = scmp.eq.s32.totalorder %s30, 0
      %p309 = por %p307, %p308
      %s311 = sadd.s32 %s310, 1
      %p314 = scmp.eq.s32.totalorder %s24, 1
      %p315 = scmp.ne.s32.totalorder %s310, %s312
      %p316 = scmp.eq.s32.totalorder %s24, 0
      %p317 = por %p315, %p316
      %p318 = scmp.ne.s32.totalorder %s310, %s312
      %p319 = scmp.eq.s32.totalorder %s29, 1
      %p320 = por %p318, %p319
      %p321 = scmp.ne.s32.totalorder %s312, %s313
      %p322 = scmp.eq.s32.totalorder %s29, 0
      %p323 = por %p321, %p322
      %p324 = scmp.ne.s32.totalorder %s312, %s313
      %p325 = scmp.eq.s32.totalorder %s30, 1
      %p326 = por %p324, %p325
      %p328 = scmp.ne.s32.totalorder %s313, %s327
      %p329 = scmp.eq.s32.totalorder %s30, 0
      %p330 = por %p328, %p329
      %s332 = sadd.s32 %s331, 1
      %p335 = scmp.eq.s32.totalorder %s24, 1
      %p336 = scmp.ne.s32.totalorder %s331, %s333
      %p337 = scmp.eq.s32.totalorder %s24, 0
      %p338 = por %p336, %p337
      %p339 = scmp.ne.s32.totalorder %s331, %s333
      %p340 = scmp.eq.s32.totalorder %s29, 1
      %p341 = por %p339, %p340
      %p342 = scmp.ne.s32.totalorder %s333, %s334
      %p343 = scmp.eq.s32.totalorder %s29, 0
      %p344 = por %p342, %p343
      %p345 = scmp.ne.s32.totalorder %s333, %s334
      %p346 = scmp.eq.s32.totalorder %s30, 1
      %p347 = por %p345, %p346
      %p349 = scmp.ne.s32.totalorder %s334, %s348
      %p350 = scmp.eq.s32.totalorder %s30, 0
      %p351 = por %p349, %p350
      %s352 = ssub.s32 %s24, %s31
      %p353 = scmp.eq.s32.totalorder %s352, 0
      %s355 = sadd.s32 %s354, 1
      %s356 = scalar_select %p353, %s354, %s355
      %p359 = pneg %p353
      %p360 = scmp.eq.s32.totalorder %s24, 1
      %p361 = por %p359, %p360
      %p362 = scmp.ne.s32.totalorder %s354, %s357
      %p363 = scmp.eq.s32.totalorder %s24, 0
      %p364 = por %p362, %p363
      %p365 = scmp.ne.s32.totalorder %s354, %s357
      %p366 = scmp.eq.s32.totalorder %s29, 1
      %p367 = por %p365, %p366
      %p368 = scmp.ne.s32.totalorder %s357, %s358
      %p369 = scmp.eq.s32.totalorder %s29, 0
      %p370 = por %p368, %p369
      %p371 = scmp.ne.s32.totalorder %s357, %s358
      %p372 = scmp.eq.s32.totalorder %s30, 1
      %p373 = por %p371, %p372
      %p375 = scmp.ne.s32.totalorder %s358, %s374
      %p376 = scmp.eq.s32.totalorder %s30, 0
      %p377 = por %p375, %p376
      %p378 = scmp.le.s32.totalorder 1, %s24
      %p379 = scmp.lt.s32.totalorder %s24, 3
      %p380 = pnand %p378, %p379
      %p381 = pneg %p380
      // Predicated region
      $region9: #{transformer_forward.1} parent=5 // pred_check
        _
      $region10: #{transformer_forward.1} parent=5 // pred_check_branch
        %383 = sbr.rel (%p380) target = $region12
      $region11: #{transformer_forward.1} parent=5 // pred_region
        %s384 = ssub.s32 %s24, 1
        // Predicated region
        $region13: #{transformer_forward.1} parent=11 // pred_check
          %p385 = pneg %p71
        $region14: #{transformer_forward.1} parent=11 // pred_check_branch
          %387 = sbr.rel (%p385) target = $region16
        $region15: #{transformer_forward.1} parent=11 // pred_region
          %389 = vsyncadd [#allocation3], 0
          %s390 = sshll.u32 %s1, 4
          %s391 = int_to_ptr.hbm [resolvable:$true] %s390
          %s392 = sshll.u32 [#allocation2], 4
          %s393 = int_to_ptr.vmem [resolvable:$true] %s392
          %398 = dma.hbm_to_vmem [thread:$0]  %s391, 6144, %s393, [#allocation3], 384, 384, 24
        $region16: #{transformer_forward.1} parent=11 // pred_fallthru
          _
        // Predicated region
        $region17: #{transformer_forward.1} parent=11 // pred_check
          %p399 = pneg %p92
        $region18: #{transformer_forward.1} parent=11 // pred_check_branch
          %401 = sbr.rel (%p399) target = $region20
        $region19: #{transformer_forward.1} parent=11 // pred_region
          _
        $region20: #{transformer_forward.1} parent=11 // pred_fallthru
          _
        // Predicated region
        $region21: #{transformer_forward.1} parent=11 // pred_check
          %p402 = pneg %p113
        $region22: #{transformer_forward.1} parent=11 // pred_check_branch
          %404 = sbr.rel (%p402) target = $region24
        $region23: #{transformer_forward.1} parent=11 // pred_region
          %406 = vsyncadd [#allocation5], 0
          %s407 = sshll.u32 %s3, 4
          %s408 = int_to_ptr.hbm [resolvable:$true] %s407
          %s409 = sshll.u32 [#allocation4], 4
          %s410 = int_to_ptr.vmem [resolvable:$true] %s409
          %415 = dma.hbm_to_vmem [thread:$0]  %s408, 2048, %s410, [#allocation5], 128, 128, 8
        $region24: #{transformer_forward.1} parent=11 // pred_fallthru
          _
        // Predicated region
        $region25: #{transformer_forward.1} parent=11 // pred_check
          %p416 = pneg %p134
        $region26: #{transformer_forward.1} parent=11 // pred_check_branch
          %418 = sbr.rel (%p416) target = $region28
        $region27: #{transformer_forward.1} parent=11 // pred_region
          _
        $region28: #{transformer_forward.1} parent=11 // pred_fallthru
          _
        // Predicated region
        $region29: #{transformer_forward.1} parent=11 // pred_check
          %p419 = pneg %p155
        $region30: #{transformer_forward.1} parent=11 // pred_check_branch
          %421 = sbr.rel (%p419) target = $region32
        $region31: #{transformer_forward.1} parent=11 // pred_region
          _
        $region32: #{transformer_forward.1} parent=11 // pred_fallthru
          _
        // Predicated region
        $region33: #{transformer_forward.1} parent=11 // pred_check
          %p422 = pneg %p176
        $region34: #{transformer_forward.1} parent=11 // pred_check_branch
          %424 = sbr.rel (%p422) target = $region36
        $region35: #{transformer_forward.1} parent=11 // pred_region
          _
        $region36: #{transformer_forward.1} parent=11 // pred_fallthru
          _
        // Predicated region
        $region37: #{transformer_forward.1} parent=11 // pred_check
          %p425 = pneg %p197
        $region38: #{transformer_forward.1} parent=11 // pred_check_branch
          %427 = sbr.rel (%p425) target = $region40
        $region39: #{transformer_forward.1} parent=11 // pred_region
          _
        $region40: #{transformer_forward.1} parent=11 // pred_fallthru
          _
        // Predicated region
        $region41: #{transformer_forward.1} parent=11 // pred_check
          %p428 = pneg %p218
        $region42: #{transformer_forward.1} parent=11 // pred_check_branch
          %430 = sbr.rel (%p428) target = $region44
        $region43: #{transformer_forward.1} parent=11 // pred_region
          _
        $region44: #{transformer_forward.1} parent=11 // pred_fallthru
          _
        // Predicated region
        $region45: #{transformer_forward.1} parent=11 // pred_check
          %p431 = pneg %p239
        $region46: #{transformer_forward.1} parent=11 // pred_check_branch
          %433 = sbr.rel (%p431) target = $region48
        $region47: #{transformer_forward.1} parent=11 // pred_region
          %435 = vsyncadd [#allocation5], 0
          %s436 = sshll.u32 %s9, 4
          %s437 = int_to_ptr.hbm [resolvable:$true] %s436
          %s438 = sshll.u32 [#allocation6], 4
          %s439 = int_to_ptr.vmem [resolvable:$true] %s438
          %444 = dma.hbm_to_vmem [thread:$0]  %s437, 16384, %s439, [#allocation5], 1024, 1024, 64
        $region48: #{transformer_forward.1} parent=11 // pred_fallthru
          _
        // Predicated region
        $region49: #{transformer_forward.1} parent=11 // pred_check
          %p445 = pneg %p260
        $region50: #{transformer_forward.1} parent=11 // pred_check_branch
          %447 = sbr.rel (%p445) target = $region52
        $region51: #{transformer_forward.1} parent=11 // pred_region
          _
        $region52: #{transformer_forward.1} parent=11 // pred_fallthru
          _
        // Predicated region
        $region53: #{transformer_forward.1} parent=11 // pred_check
          %p448 = pneg %p281
        $region54: #{transformer_forward.1} parent=11 // pred_check_branch
          %450 = sbr.rel (%p448) target = $region56
        $region55: #{transformer_forward.1} parent=11 // pred_region
          %452 = vsyncadd [#allocation8], 0
          %s453 = sshll.u32 %s11, 4
          %s454 = int_to_ptr.hbm [resolvable:$true] %s453
          %s455 = sshll.u32 [#allocation7], 4
          %s456 = int_to_ptr.vmem [resolvable:$true] %s455
          %461 = dma.hbm_to_vmem [thread:$0]  %s454, 16384, %s456, [#allocation8], 64, 64, 4
        $region56: #{transformer_forward.1} parent=11 // pred_fallthru
          _
        // Predicated region
        $region57: #{transformer_forward.1} parent=11 // pred_check
          %p462 = pneg %p302
        $region58: #{transformer_forward.1} parent=11 // pred_check_branch
          %464 = sbr.rel (%p462) target = $region60
        $region59: #{transformer_forward.1} parent=11 // pred_region
          _
        $region60: #{transformer_forward.1} parent=11 // pred_fallthru
          _
        // Predicated region
        $region61: #{transformer_forward.1} parent=11 // pred_check
          %p465 = pneg %p323
        $region62: #{transformer_forward.1} parent=11 // pred_check_branch
          %467 = sbr.rel (%p465) target = $region64
        $region63: #{transformer_forward.1} parent=11 // pred_region
          %469 = vsyncadd [#allocation8], 0
          %s470 = sshll.u32 %s13, 4
          %s471 = int_to_ptr.hbm [resolvable:$true] %s470
          %s472 = sshll.u32 [#allocation9], 4
          %s473 = int_to_ptr.vmem [resolvable:$true] %s472
          %478 = dma.hbm_to_vmem [thread:$0]  %s471, 2048, %s473, [#allocation8], 128, 128, 8
        $region64: #{transformer_forward.1} parent=11 // pred_fallthru
          _
        // Predicated region
        $region65: #{transformer_forward.1} parent=11 // pred_check
          %p479 = pneg %p344
        $region66: #{transformer_forward.1} parent=11 // pred_check_branch
          %481 = sbr.rel (%p479) target = $region68
        $region67: #{transformer_forward.1} parent=11 // pred_region
          _
        $region68: #{transformer_forward.1} parent=11 // pred_fallthru
          _
      $region12: #{transformer_forward.1} parent=5 // pred_fallthru
        _
      %p482 = scmp.lt.s32.totalorder %s24, 2
      // Predicated region
      $region69: #{transformer_forward.1} parent=5 // pred_check
        %p483 = pneg %p482
      $region70: #{transformer_forward.1} parent=5 // pred_check_branch
        %485 = sbr.rel (%p483) target = $region72
      $region71: #{transformer_forward.1} parent=5 // pred_region
        // Predicated region
        $region73: #{transformer_forward.1} parent=71 // pred_check
          %p486 = pneg %p44
        $region74: #{transformer_forward.1} parent=71 // pred_check_branch
          %488 = sbr.rel (%p486) target = $region76
        $region75: #{transformer_forward.1} parent=71 // pred_region
          %p489 = scmp.lt.s32.totalorder %s24, 1
          %s490 = scalar_select %p489, %s24, 1
          %s491 = smul.addr %s490, 8
          %s492 = scalar_lea.vmem %s0, %s491
        $region76: #{transformer_forward.1} parent=71 // pred_fallthru
          _
      $region72: #{transformer_forward.1} parent=5 // pred_fallthru
        _
      %p493 = scmp.le.s32.totalorder 1, %s24
      %p494 = scmp.lt.s32.totalorder %s24, 3
      %p495 = pnand %p493, %p494
      %p496 = pneg %p495
      // Predicated region
      $region77: #{transformer_forward.1} parent=5 // pred_check
        _
      $region78: #{transformer_forward.1} parent=5 // pred_check_branch
        %498 = sbr.rel (%p495) target = $region80
      $region79: #{transformer_forward.1} parent=5 // pred_region
        %s499 = ssub.s32 %s24, 1
        // Predicated region
        $region81: #{transformer_forward.1} parent=79 // pred_check
          %p500 = pneg %p71
        $region82: #{transformer_forward.1} parent=79 // pred_check_branch
          %502 = sbr.rel (%p500) target = $region84
        $region83: #{transformer_forward.1} parent=79 // pred_region
          %504 = dma.done [#allocation3], 6144
        $region84: #{transformer_forward.1} parent=79 // pred_fallthru
          _
        // Predicated region
        $region85: #{transformer_forward.1} parent=79 // pred_check
          %p505 = pneg %p113
        $region86: #{transformer_forward.1} parent=79 // pred_check_branch
          %507 = sbr.rel (%p505) target = $region88
        $region87: #{transformer_forward.1} parent=79 // pred_region
          %509 = dma.done [#allocation5], 2048
        $region88: #{transformer_forward.1} parent=79 // pred_fallthru
          _
        // Predicated region
        $region89: #{transformer_forward.1} parent=79 // pred_check
          %p510 = pneg %p239
        $region90: #{transformer_forward.1} parent=79 // pred_check_branch
          %512 = sbr.rel (%p510) target = $region92
        $region91: #{transformer_forward.1} parent=79 // pred_region
          %514 = dma.done [#allocation5], 16384
        $region92: #{transformer_forward.1} parent=79 // pred_fallthru
          _
        // Predicated region
        $region93: #{transformer_forward.1} parent=79 // pred_check
          %p515 = pneg %p281
        $region94: #{transformer_forward.1} parent=79 // pred_check_branch
          %517 = sbr.rel (%p515) target = $region96
        $region95: #{transformer_forward.1} parent=79 // pred_region
          %519 = dma.done [#allocation8], 16384
        $region96: #{transformer_forward.1} parent=79 // pred_fallthru
          _
        // Predicated region
        $region97: #{transformer_forward.1} parent=79 // pred_check
          %p520 = pneg %p323
        $region98: #{transformer_forward.1} parent=79 // pred_check_branch
          %522 = sbr.rel (%p520) target = $region100
        $region99: #{transformer_forward.1} parent=79 // pred_region
          %524 = dma.done [#allocation8], 2048
        $region100: #{transformer_forward.1} parent=79 // pred_fallthru
          _
        %p525 = scmp.lt.s32.totalorder %s29, 1
        %s526 = scalar_select %p525, %s29, 1
        %s527 = smul.addr %s526, 8
        %s528 = scalar_lea.vmem %s0, %s527
        %p529 = pneg %p50
        %p530 = pneg %p47
        %p531 = pneg %p71
        %p532 = pneg %p68
        %p533 = pneg %p92
        %p534 = pneg %p89
        %p535 = pneg %p113
        %p536 = pneg %p110
        %p537 = pneg %p134
        %p538 = pneg %p131
        %p539 = pneg %p155
        %p540 = pneg %p152
        %p541 = pneg %p176
        %p542 = pneg %p173
        %p543 = pneg %p197
        %p544 = pneg %p194
        %p545 = pneg %p218
        %p546 = pneg %p215
        %p547 = pneg %p239
        %p548 = pneg %p236
        %p549 = pneg %p260
        %p550 = pneg %p257
        %p551 = pneg %p281
        %p552 = pneg %p278
        %p553 = pneg %p302
        %p554 = pneg %p299
        %p555 = pneg %p323
        %p556 = pneg %p320
        %p557 = pneg %p344
        %p558 = pneg %p341
        %p559 = pneg %p370
        %p560 = pneg %p367
        %p561 = scmp.lt.s32.totalorder %s29, 1
        %s562 = scalar_select %p561, %s29, 1
        %s563 = smul.addr %s562, 8
        %s564 = scalar_lea.vmem %s15, %s563
        %p565 = scmp.lt.s32.totalorder %s29, 1
        %s566 = scalar_select %p565, %s29, 1
        %s567 = smul.addr %s566, 8
        %s568 = scalar_lea.vmem %s0, %s567
        %p569 = scmp.lt.s32.totalorder %s29, 1
        %s570 = scalar_select %p569, %s29, 1
        %s571 = smul.addr %s570, 8
        %s572 = scalar_lea.vmem %s15, %s571
        %v573 = vld [vmem:[%s568] sm:$0xff]
        %v574 = vlaneseq
        %v575 = vand.u32 %v574, 127
        %vm576 = vcmp.lt.s32.totalorder %v575, 7
        %v577 = vld [vmem:[#allocation2] sm:$0xff]
        %v578 = vld [vmem:[#allocation2 + $0x8] sm:$0xff]
        %v579 = vld [vmem:[#allocation2 + $0x10] sm:$0xff]
        %v580 = vld [vmem:[#allocation2 + $0x18] sm:$0xff]
        %v581 = vld [vmem:[#allocation2 + $0x20] sm:$0xff]
        %v582 = vld [vmem:[#allocation2 + $0x28] sm:$0xff]
        %v583 = vld [vmem:[#allocation2 + $0x30] sm:$0xff]
        %v584 = vld [vmem:[#allocation2 + $0x38] sm:$0xff]
        %v585 = vld [vmem:[#allocation2 + $0x40] sm:$0xff]
        %v586 = vld [vmem:[#allocation2 + $0x48] sm:$0xff]
        %v587 = vld [vmem:[#allocation2 + $0x50] sm:$0xff]
        %v588 = vld [vmem:[#allocation2 + $0x58] sm:$0xff]
        %v589 = vld [vmem:[#allocation2 + $0x60] sm:$0xff]
        %v590 = vld [vmem:[#allocation2 + $0x68] sm:$0xff]
        %v591 = vld [vmem:[#allocation2 + $0x70] sm:$0xff]
        %v592 = vld [vmem:[#allocation2 + $0x78] sm:$0xff]
        %v593 = vld [vmem:[#allocation2 + $0x80] sm:$0xff]
        %v594 = vld [vmem:[#allocation2 + $0x88] sm:$0xff]
        %v595 = vld [vmem:[#allocation2 + $0x90] sm:$0xff]
        %v596 = vld [vmem:[#allocation2 + $0x98] sm:$0xff]
        %v597 = vld [vmem:[#allocation2 + $0xa0] sm:$0xff]
        %v598 = vld [vmem:[#allocation2 + $0xa8] sm:$0xff]
        %v599 = vld [vmem:[#allocation2 + $0xb0] sm:$0xff]
        %v600 = vld [vmem:[#allocation2 + $0xb8] sm:$0xff]
        %v601 = vld [vmem:[#allocation2 + $0xc0] sm:$0xff]
        %v602 = vld [vmem:[#allocation2 + $0xc8] sm:$0xff]
        %v603 = vld [vmem:[#allocation2 + $0xd0] sm:$0xff]
        %v604 = vld [vmem:[#allocation2 + $0xd8] sm:$0xff]
        %v605 = vld [vmem:[#allocation2 + $0xe0] sm:$0xff]
        %v606 = vld [vmem:[#allocation2 + $0xe8] sm:$0xff]
        %v607 = vld [vmem:[#allocation2 + $0xf0] sm:$0xff]
        %v608 = vld [vmem:[#allocation2 + $0xf8] sm:$0xff]
        %v609 = vld [vmem:[#allocation2 + $0x100] sm:$0xff]
        %v610 = vld [vmem:[#allocation2 + $0x108] sm:$0xff]
        %v611 = vld [vmem:[#allocation2 + $0x110] sm:$0xff]
        %v612 = vld [vmem:[#allocation2 + $0x118] sm:$0xff]
        %v613 = vld [vmem:[#allocation2 + $0x120] sm:$0xff]
        %v614 = vld [vmem:[#allocation2 + $0x128] sm:$0xff]
        %v615 = vld [vmem:[#allocation2 + $0x130] sm:$0xff]
        %v616 = vld [vmem:[#allocation2 + $0x138] sm:$0xff]
        %v617 = vld [vmem:[#allocation2 + $0x140] sm:$0xff]
        %v618 = vld [vmem:[#allocation2 + $0x148] sm:$0xff]
        %v619 = vld [vmem:[#allocation2 + $0x150] sm:$0xff]
        %v620 = vld [vmem:[#allocation2 + $0x158] sm:$0xff]
        %v621 = vld [vmem:[#allocation2 + $0x160] sm:$0xff]
        %v622 = vld [vmem:[#allocation2 + $0x168] sm:$0xff]
        %v623 = vld [vmem:[#allocation2 + $0x170] sm:$0xff]
        %v624 = vld [vmem:[#allocation2 + $0x178] sm:$0xff]
        %v625 = vld [vmem:[%s2] sm:$0x7]
        %v627 = vperm.slane %v625, 0
        %v628 = vperm.slane %v625, 1
        %v629 = vperm.slane %v625, 2
        %633 = vmatpush.msra.mxu0 %v622
        %634 = vmatpush.msra.mxu0 %v619
        %635 = vmatpush.msra.mxu0 %v616
        %636 = vmatpush.msra.mxu0 %v613
        %637 = vmatpush.msra.mxu0 %v610
        %638 = vmatpush.msra.mxu0 %v607
        %639 = vmatpush.msra.mxu0 %v604
        %640 = vmatpush.msra.mxu0 %v601
        %641 = vmatpush.msra.mxu0 %v598
        %642 = vmatpush.msra.mxu0 %v595
        %643 = vmatpush.msra.mxu0 %v592
        %644 = vmatpush.msra.mxu0 %v589
        %645 = vmatpush.msra.mxu0 %v586
        %646 = vmatpush.msra.mxu0 %v583
        %647 = vmatpush.msra.mxu0 %v580
        %648 = vmatpush.msra.mxu0 %v577
        %649 = vmatmul.f32.gmra.mxu0 %v573
        %v650 = vpop.f32.mrf.mxu0
        %v651 = vadd.f32 %v627, %v650
        %652 = vdwg.mxu0
        %653 = vmatpush.msra.mxu0 %v623
        %654 = vmatpush.msra.mxu0 %v620
        %655 = vmatpush.msra.mxu0 %v617
        %656 = vmatpush.msra.mxu0 %v614
        %657 = vmatpush.msra.mxu0 %v611
        %658 = vmatpush.msra.mxu0 %v608
        %659 = vmatpush.msra.mxu0 %v605
        %660 = vmatpush.msra.mxu0 %v602
        %661 = vmatpush.msra.mxu0 %v599
        %662 = vmatpush.msra.mxu0 %v596
        %663 = vmatpush.msra.mxu0 %v593
        %664 = vmatpush.msra.mxu0 %v590
        %665 = vmatpush.msra.mxu0 %v587
        %666 = vmatpush.msra.mxu0 %v584
        %667 = vmatpush.msra.mxu0 %v581
        %668 = vmatpush.msra.mxu0 %v578
        %669 = vmatmul.f32.gmra.mxu0 %v573
        %v670 = vpop.f32.mrf.mxu0
        %v671 = vadd.f32 %v628, %v670
        %672 = vdwg.mxu0
        %673 = vmatpush.msra.mxu0 %v624
        %674 = vmatpush.msra.mxu0 %v621
        %675 = vmatpush.msra.mxu0 %v618
        %676 = vmatpush.msra.mxu0 %v615
        %677 = vmatpush.msra.mxu0 %v612
        %678 = vmatpush.msra.mxu0 %v609
        %679 = vmatpush.msra.mxu0 %v606
        %680 = vmatpush.msra.mxu0 %v603
        %681 = vmatpush.msra.mxu0 %v600
        %682 = vmatpush.msra.mxu0 %v597
        %683 = vmatpush.msra.mxu0 %v594
        %684 = vmatpush.msra.mxu0 %v591
        %685 = vmatpush.msra.mxu0 %v588
        %686 = vmatpush.msra.mxu0 %v585
        %687 = vmatpush.msra.mxu0 %v582
        %688 = vmatpush.msra.mxu0 %v579
        %689 = vmatmul.f32.gmra.mxu0 %v573
        %v690 = vpop.f32.mrf.mxu0
        %v691 = vadd.f32 %v629, %v690
        %692 = vdwg.mxu0
        %693 = vmatpush.xpose.msra.mxu0 0.0
        %694 = vmatpush.xpose.msra.mxu0 0.0
        %695 = vmatpush.xpose.msra.mxu0 0.0
        %696 = vmatpush.xpose.msra.mxu0 0.0
        %697 = vmatpush.xpose.msra.mxu0 0.0
        %698 = vmatpush.xpose.msra.mxu0 0.0
        %699 = vmatpush.xpose.msra.mxu0 0.0
        %700 = vmatpush.xpose.msra.mxu0 0.0
        %701 = vmatpush.xpose.msra.mxu0 0.0
        %702 = vmatpush.xpose.msra.mxu0 0.0
        %703 = vmatpush.xpose.msra.mxu0 0.0
        %704 = vmatpush.xpose.msra.mxu0 0.0
        %705 = vmatpush.xpose.msra.mxu0 0.0
        %706 = vmatpush.xpose.msra.mxu0 0.0
        %707 = vmatpush.xpose.msra.mxu0 0.0
        %708 = vmatpush.xpose.msra.mxu0 %v671
        %709 = vmatmul.f32.gmra.mxu0 %v651
        %v710 = vpop.f32.mrf.mxu0
        %v711 = vadd.f32 0.0, %v710
        %712 = vdwg.mxu0
        %v713 = vmul.f32 %v711, 0.37796447
        %v714 = vlaneseq
        %v715 = vshrl.u32 %v714, 7
        %vm716 = vcmp.le.s32.totalorder %v575, %v715
        %v717 = vsel %vm716, %v713, -inf
        %vm718 = vcmask 64512
        %v719 = vsel %vm718, %v717, -inf
        %720 = vmax.xlane.f32.xlu0 %v719
        %v721 = vpop.xlane.xlu0 %720
        %v722 = vsub.f32 %v717, %v721
        %v723 = vmul.f32 %v722, 1.442695
        %v724 = vpow.pop %v723
        %v725 = vsel %vm718, %v724, 0.0
        %726 = vadd.xlane.f32.xlu0 %v725
        %v727 = vpop.xlane.xlu0 %726
        %v728 = vrcp.pop %v727
        %v729 = vmul.f32 %v724, %v728
        %v731 = vsel %vm718, %v729, 0
        %733 = vmatpush.msra.mxu0 0.0
        %734 = vmatpush.msra.mxu0 0.0
        %735 = vmatpush.msra.mxu0 0.0
        %736 = vmatpush.msra.mxu0 0.0
        %737 = vmatpush.msra.mxu0 0.0
        %738 = vmatpush.msra.mxu0 0.0
        %739 = vmatpush.msra.mxu0 0.0
        %740 = vmatpush.msra.mxu0 0.0
        %741 = vmatpush.msra.mxu0 0.0
        %742 = vmatpush.msra.mxu0 0.0
        %743 = vmatpush.msra.mxu0 0.0
        %744 = vmatpush.msra.mxu0 0.0
        %745 = vmatpush.msra.mxu0 0.0
        %746 = vmatpush.msra.mxu0 0.0
        %747 = vmatpush.msra.mxu0 0.0
        %748 = vmatpush.msra.mxu0 %v691
        %749 = vmatmul.f32.gmra.mxu0 %v731
        %v750 = vpop.f32.mrf.mxu0
        %v751 = vadd.f32 0.0, %v750
        %752 = vdwg.mxu0
        %v753 = vld [vmem:[#allocation4] sm:$0xff]
        %v754 = vld [vmem:[#allocation4 + $0x8] sm:$0xff]
        %v755 = vld [vmem:[#allocation4 + $0x10] sm:$0xff]
        %v756 = vld [vmem:[#allocation4 + $0x18] sm:$0xff]
        %v757 = vld [vmem:[#allocation4 + $0x20] sm:$0xff]
        %v758 = vld [vmem:[#allocation4 + $0x28] sm:$0xff]
        %v759 = vld [vmem:[#allocation4 + $0x30] sm:$0xff]
        %v760 = vld [vmem:[#allocation4 + $0x38] sm:$0xff]
        %v761 = vld [vmem:[#allocation4 + $0x40] sm:$0xff]
        %v762 = vld [vmem:[#allocation4 + $0x48] sm:$0xff]
        %v763 = vld [vmem:[#allocation4 + $0x50] sm:$0xff]
        %v764 = vld [vmem:[#allocation4 + $0x58] sm:$0xff]
        %v765 = vld [vmem:[#allocation4 + $0x60] sm:$0xff]
        %v766 = vld [vmem:[#allocation4 + $0x68] sm:$0xff]
        %v767 = vld [vmem:[#allocation4 + $0x70] sm:$0xff]
        %v768 = vld [vmem:[#allocation4 + $0x78] sm:$0xff]
        %v769 = vld [vmem:[%s4] sm:$0x1]
        %v771 = vperm.slane %v769, 0
        %773 = vmatpush.msra.mxu0 %v768
        %774 = vmatpush.msra.mxu0 %v767
        %775 = vmatpush.msra.mxu0 %v766
        %776 = vmatpush.msra.mxu0 %v765
        %777 = vmatpush.msra.mxu0 %v764
        %778 = vmatpush.msra.mxu0 %v763
        %779 = vmatpush.msra.mxu0 %v762
        %780 = vmatpush.msra.mxu0 %v761
        %781 = vmatpush.msra.mxu0 %v760
        %782 = vmatpush.msra.mxu0 %v759
        %783 = vmatpush.msra.mxu0 %v758
        %784 = vmatpush.msra.mxu0 %v757
        %785 = vmatpush.msra.mxu0 %v756
        %786 = vmatpush.msra.mxu0 %v755
        %787 = vmatpush.msra.mxu0 %v754
        %788 = vmatpush.msra.mxu0 %v753
        %789 = vmatmul.f32.gmra.mxu0 %v751
        %v790 = vpop.f32.mrf.mxu0
        %v791 = vadd.f32 %v771, %v790
        %792 = vdwg.mxu0
        %v793 = vadd.f32 %v573, %v791
        %v794 = vld [vmem:[%s5] sm:$0x1]
        %v795 = vld [vmem:[%s6] sm:$0x1]
        %796 = vadd.xlane.f32.xlu0 %v793
        %v797 = vpop.xlane.xlu0 %796
        %v798 = vmul.f32 %v797, 0.14285715
        %v799 = vsub.f32 %v793, %v798
        %v800 = vmul.f32 %v799, %v799
        %v801 = vsel %vm576, 1, 0
        %vm802 = vcmp.eq.s32.totalorder %v801, 1
        %v803 = vsel %vm802, %v800, 0.0
        %804 = vadd.xlane.f32.xlu0 %v803
        %v805 = vpop.xlane.xlu0 %804
        %v806 = vmul.f32 %v805, 0.14285715
        %v807 = vadd.f32 %v806, 1e-05
        %v808 = vrsqrt.pop %v807
        %v809 = vmul.f32 %v808, %v807
        %v810 = vmul.f32 %v809, %v808
        %v811 = vmul.f32 0.5, %v810
        %v812 = vsub.f32 1.5, %v811
        %v813 = vmul.f32 %v808, %v812
        %vm814 = vweird.f32 %v807
        %vm815 = vweird.f32 %v808
        %vm816 = vmor %vm814, %vm815
        %v817 = vsel %vm816, %v808, %v813
        %v818 = vmul.f32 %v799, %v817
        %v820 = vperm.slane %v794, 0
        %v822 = vmul.f32 %v818, %v820
        %v824 = vperm.slane %v795, 0
        %v826 = vadd.f32 %v822, %v824
        %v827 = vpack.c.bf16 %v826, %v826
        %v828 = vld [vmem:[#allocation6] sm:$0xff]
        %v829 = vld [vmem:[#allocation6 + $0x8] sm:$0xff]
        %v830 = vld [vmem:[#allocation6 + $0x10] sm:$0xff]
        %v831 = vld [vmem:[#allocation6 + $0x18] sm:$0xff]
        %v832 = vld [vmem:[#allocation6 + $0x20] sm:$0xff]
        %v833 = vld [vmem:[#allocation6 + $0x28] sm:$0xff]
        %v834 = vld [vmem:[#allocation6 + $0x30] sm:$0xff]
        %v835 = vld [vmem:[#allocation6 + $0x38] sm:$0xff]
        %v836 = vld [vmem:[#allocation6 + $0x40] sm:$0xff]
        %v837 = vld [vmem:[#allocation6 + $0x48] sm:$0xff]
        %v838 = vld [vmem:[#allocation6 + $0x50] sm:$0xff]
        %v839 = vld [vmem:[#allocation6 + $0x58] sm:$0xff]
        %v840 = vld [vmem:[#allocation6 + $0x60] sm:$0xff]
        %v841 = vld [vmem:[#allocation6 + $0x68] sm:$0xff]
        %v842 = vld [vmem:[#allocation6 + $0x70] sm:$0xff]
        %v843 = vld [vmem:[#allocation6 + $0x78] sm:$0xff]
        %v844 = vld [vmem:[#allocation6 + $0x80] sm:$0xff]
        %v845 = vld [vmem:[#allocation6 + $0x88] sm:$0xff]
        %v846 = vld [vmem:[#allocation6 + $0x90] sm:$0xff]
        %v847 = vld [vmem:[#allocation6 + $0x98] sm:$0xff]
        %v848 = vld [vmem:[#allocation6 + $0xa0] sm:$0xff]
        %v849 = vld [vmem:[#allocation6 + $0xa8] sm:$0xff]
        %v850 = vld [vmem:[#allocation6 + $0xb0] sm:$0xff]
        %v851 = vld [vmem:[#allocation6 + $0xb8] sm:$0xff]
        %v852 = vld [vmem:[#allocation6 + $0xc0] sm:$0xff]
        %v853 = vld [vmem:[#allocation6 + $0xc8] sm:$0xff]
        %v854 = vld [vmem:[#allocation6 + $0xd0] sm:$0xff]
        %v855 = vld [vmem:[#allocation6 + $0xd8] sm:$0xff]
        %v856 = vld [vmem:[#allocation6 + $0xe0] sm:$0xff]
        %v857 = vld [vmem:[#allocation6 + $0xe8] sm:$0xff]
        %v858 = vld [vmem:[#allocation6 + $0xf0] sm:$0xff]
        %v859 = vld [vmem:[#allocation6 + $0xf8] sm:$0xff]
        %v860 = vld [vmem:[#allocation6 + $0x100] sm:$0xff]
        %v861 = vld [vmem:[#allocation6 + $0x108] sm:$0xff]
        %v862 = vld [vmem:[#allocation6 + $0x110] sm:$0xff]
        %v863 = vld [vmem:[#allocation6 + $0x118] sm:$0xff]
        %v864 = vld [vmem:[#allocation6 + $0x120] sm:$0xff]
        %v865 = vld [vmem:[#allocation6 + $0x128] sm:$0xff]
        %v866 = vld [vmem:[#allocation6 + $0x130] sm:$0xff]
        %v867 = vld [vmem:[#allocation6 + $0x138] sm:$0xff]
        %v868 = vld [vmem:[#allocation6 + $0x140] sm:$0xff]
        %v869 = vld [vmem:[#allocation6 + $0x148] sm:$0xff]
        %v870 = vld [vmem:[#allocation6 + $0x150] sm:$0xff]
        %v871 = vld [vmem:[#allocation6 + $0x158] sm:$0xff]
        %v872 = vld [vmem:[#allocation6 + $0x160] sm:$0xff]
        %v873 = vld [vmem:[#allocation6 + $0x168] sm:$0xff]
        %v874 = vld [vmem:[#allocation6 + $0x170] sm:$0xff]
        %v875 = vld [vmem:[#allocation6 + $0x178] sm:$0xff]
        %v876 = vld [vmem:[#allocation6 + $0x180] sm:$0xff]
        %v877 = vld [vmem:[#allocation6 + $0x188] sm:$0xff]
        %v878 = vld [vmem:[#allocation6 + $0x190] sm:$0xff]
        %v879 = vld [vmem:[#allocation6 + $0x198] sm:$0xff]
        %v880 = vld [vmem:[#allocation6 + $0x1a0] sm:$0xff]
        %v881 = vld [vmem:[#allocation6 + $0x1a8] sm:$0xff]
        %v882 = vld [vmem:[#allocation6 + $0x1b0] sm:$0xff]
        %v883 = vld [vmem:[#allocation6 + $0x1b8] sm:$0xff]
        %v884 = vld [vmem:[#allocation6 + $0x1c0] sm:$0xff]
        %v885 = vld [vmem:[#allocation6 + $0x1c8] sm:$0xff]
        %v886 = vld [vmem:[#allocation6 + $0x1d0] sm:$0xff]
        %v887 = vld [vmem:[#allocation6 + $0x1d8] sm:$0xff]
        %v888 = vld [vmem:[#allocation6 + $0x1e0] sm:$0xff]
        %v889 = vld [vmem:[#allocation6 + $0x1e8] sm:$0xff]
        %v890 = vld [vmem:[#allocation6 + $0x1f0] sm:$0xff]
        %v891 = vld [vmem:[#allocation6 + $0x1f8] sm:$0xff]
        %v892 = vld [vmem:[#allocation6 + $0x200] sm:$0xff]
        %v893 = vld [vmem:[#allocation6 + $0x208] sm:$0xff]
        %v894 = vld [vmem:[#allocation6 + $0x210] sm:$0xff]
        %v895 = vld [vmem:[#allocation6 + $0x218] sm:$0xff]
        %v896 = vld [vmem:[#allocation6 + $0x220] sm:$0xff]
        %v897 = vld [vmem:[#allocation6 + $0x228] sm:$0xff]
        %v898 = vld [vmem:[#allocation6 + $0x230] sm:$0xff]
        %v899 = vld [vmem:[#allocation6 + $0x238] sm:$0xff]
        %v900 = vld [vmem:[#allocation6 + $0x240] sm:$0xff]
        %v901 = vld [vmem:[#allocation6 + $0x248] sm:$0xff]
        %v902 = vld [vmem:[#allocation6 + $0x250] sm:$0xff]
        %v903 = vld [vmem:[#allocation6 + $0x258] sm:$0xff]
        %v904 = vld [vmem:[#allocation6 + $0x260] sm:$0xff]
        %v905 = vld [vmem:[#allocation6 + $0x268] sm:$0xff]
        %v906 = vld [vmem:[#allocation6 + $0x270] sm:$0xff]
        %v907 = vld [vmem:[#allocation6 + $0x278] sm:$0xff]
        %v908 = vld [vmem:[#allocation6 + $0x280] sm:$0xff]
        %v909 = vld [vmem:[#allocation6 + $0x288] sm:$0xff]
        %v910 = vld [vmem:[#allocation6 + $0x290] sm:$0xff]
        %v911 = vld [vmem:[#allocation6 + $0x298] sm:$0xff]
        %v912 = vld [vmem:[#allocation6 + $0x2a0] sm:$0xff]
        %v913 = vld [vmem:[#allocation6 + $0x2a8] sm:$0xff]
        %v914 = vld [vmem:[#allocation6 + $0x2b0] sm:$0xff]
        %v915 = vld [vmem:[#allocation6 + $0x2b8] sm:$0xff]
        %v916 = vld [vmem:[#allocation6 + $0x2c0] sm:$0xff]
        %v917 = vld [vmem:[#allocation6 + $0x2c8] sm:$0xff]
        %v918 = vld [vmem:[#allocation6 + $0x2d0] sm:$0xff]
        %v919 = vld [vmem:[#allocation6 + $0x2d8] sm:$0xff]
        %v920 = vld [vmem:[#allocation6 + $0x2e0] sm:$0xff]
        %v921 = vld [vmem:[#allocation6 + $0x2e8] sm:$0xff]
        %v922 = vld [vmem:[#allocation6 + $0x2f0] sm:$0xff]
        %v923 = vld [vmem:[#allocation6 + $0x2f8] sm:$0xff]
        %v924 = vld [vmem:[#allocation6 + $0x300] sm:$0xff]
        %v925 = vld [vmem:[#allocation6 + $0x308] sm:$0xff]
        %v926 = vld [vmem:[#allocation6 + $0x310] sm:$0xff]
        %v927 = vld [vmem:[#allocation6 + $0x318] sm:$0xff]
        %v928 = vld [vmem:[#allocation6 + $0x320] sm:$0xff]
        %v929 = vld [vmem:[#allocation6 + $0x328] sm:$0xff]
        %v930 = vld [vmem:[#allocation6 + $0x330] sm:$0xff]
        %v931 = vld [vmem:[#allocation6 + $0x338] sm:$0xff]
        %v932 = vld [vmem:[#allocation6 + $0x340] sm:$0xff]
        %v933 = vld [vmem:[#allocation6 + $0x348] sm:$0xff]
        %v934 = vld [vmem:[#allocation6 + $0x350] sm:$0xff]
        %v935 = vld [vmem:[#allocation6 + $0x358] sm:$0xff]
        %v936 = vld [vmem:[#allocation6 + $0x360] sm:$0xff]
        %v937 = vld [vmem:[#allocation6 + $0x368] sm:$0xff]
        %v938 = vld [vmem:[#allocation6 + $0x370] sm:$0xff]
        %v939 = vld [vmem:[#allocation6 + $0x378] sm:$0xff]
        %v940 = vld [vmem:[#allocation6 + $0x380] sm:$0xff]
        %v941 = vld [vmem:[#allocation6 + $0x388] sm:$0xff]
        %v942 = vld [vmem:[#allocation6 + $0x390] sm:$0xff]
        %v943 = vld [vmem:[#allocation6 + $0x398] sm:$0xff]
        %v944 = vld [vmem:[#allocation6 + $0x3a0] sm:$0xff]
        %v945 = vld [vmem:[#allocation6 + $0x3a8] sm:$0xff]
        %v946 = vld [vmem:[#allocation6 + $0x3b0] sm:$0xff]
        %v947 = vld [vmem:[#allocation6 + $0x3b8] sm:$0xff]
        %v948 = vld [vmem:[#allocation6 + $0x3c0] sm:$0xff]
        %v949 = vld [vmem:[#allocation6 + $0x3c8] sm:$0xff]
        %v950 = vld [vmem:[#allocation6 + $0x3d0] sm:$0xff]
        %v951 = vld [vmem:[#allocation6 + $0x3d8] sm:$0xff]
        %v952 = vld [vmem:[#allocation6 + $0x3e0] sm:$0xff]
        %v953 = vld [vmem:[#allocation6 + $0x3e8] sm:$0xff]
        %v954 = vld [vmem:[#allocation6 + $0x3f0] sm:$0xff]
        %v955 = vld [vmem:[#allocation6 + $0x3f8] sm:$0xff]
        %v956 = vld [vmem:[%s10] sm:$0xff]
        %v957 = vld [vmem:[%s10 + $0x8] sm:$0xff]
        %v960 = vperm.slane %v956, 0
        %v961 = vperm.slane %v956, 1
        %v962 = vperm.slane %v956, 2
        %v963 = vperm.slane %v956, 3
        %v964 = vperm.slane %v956, 4
        %v965 = vperm.slane %v956, 5
        %v966 = vperm.slane %v956, 6
        %v967 = vperm.slane %v956, 7
        %v968 = vperm.slane %v957, 0
        %v969 = vperm.slane %v957, 1
        %v970 = vperm.slane %v957, 2
        %v971 = vperm.slane %v957, 3
        %v972 = vperm.slane %v957, 4
        %v973 = vperm.slane %v957, 5
        %v974 = vperm.slane %v957, 6
        %v975 = vperm.slane %v957, 7
        %v1120 = vunpack.c.l.b16 %v828
        %v1121 = vunpack.c.h.b16 %v828
        %v1122 = vunpack.c.l.b16 %v829
        %v1123 = vunpack.c.h.b16 %v829
        %v1124 = vunpack.c.l.b16 %v830
        %v1125 = vunpack.c.h.b16 %v830
        %v1126 = vunpack.c.l.b16 %v831
        %v1127 = vunpack.c.h.b16 %v831
        %v1128 = vunpack.c.l.b16 %v832
        %v1129 = vunpack.c.h.b16 %v832
        %v1130 = vunpack.c.l.b16 %v833
        %v1131 = vunpack.c.h.b16 %v833
        %v1132 = vunpack.c.l.b16 %v834
        %v1133 = vunpack.c.h.b16 %v834
        %v1134 = vunpack.c.l.b16 %v835
        %v1135 = vunpack.c.h.b16 %v835
        %v1136 = vunpack.c.l.b16 %v836
        %v1137 = vunpack.c.h.b16 %v836
        %v1138 = vunpack.c.l.b16 %v837
        %v1139 = vunpack.c.h.b16 %v837
        %v1140 = vunpack.c.l.b16 %v838
        %v1141 = vunpack.c.h.b16 %v838
        %v1142 = vunpack.c.l.b16 %v839
        %v1143 = vunpack.c.h.b16 %v839
        %v1144 = vunpack.c.l.b16 %v840
        %v1145 = vunpack.c.h.b16 %v840
        %v1146 = vunpack.c.l.b16 %v841
        %v1147 = vunpack.c.h.b16 %v841
        %v1148 = vunpack.c.l.b16 %v842
        %v1149 = vunpack.c.h.b16 %v842
        %v1150 = vunpack.c.l.b16 %v843
        %v1151 = vunpack.c.h.b16 %v843
        %v1152 = vunpack.c.l.b16 %v844
        %v1153 = vunpack.c.h.b16 %v844
        %v1154 = vunpack.c.l.b16 %v845
        %v1155 = vunpack.c.h.b16 %v845
        %v1156 = vunpack.c.l.b16 %v846
        %v1157 = vunpack.c.h.b16 %v846
        %v1158 = vunpack.c.l.b16 %v847
        %v1159 = vunpack.c.h.b16 %v847
        %v1160 = vunpack.c.l.b16 %v848
        %v1161 = vunpack.c.h.b16 %v848
        %v1162 = vunpack.c.l.b16 %v849
        %v1163 = vunpack.c.h.b16 %v849
        %v1164 = vunpack.c.l.b16 %v850
        %v1165 = vunpack.c.h.b16 %v850
        %v1166 = vunpack.c.l.b16 %v851
        %v1167 = vunpack.c.h.b16 %v851
        %v1168 = vunpack.c.l.b16 %v852
        %v1169 = vunpack.c.h.b16 %v852
        %v1170 = vunpack.c.l.b16 %v853
        %v1171 = vunpack.c.h.b16 %v853
        %v1172 = vunpack.c.l.b16 %v854
        %v1173 = vunpack.c.h.b16 %v854
        %v1174 = vunpack.c.l.b16 %v855
        %v1175 = vunpack.c.h.b16 %v855
        %v1176 = vunpack.c.l.b16 %v856
        %v1177 = vunpack.c.h.b16 %v856
        %v1178 = vunpack.c.l.b16 %v857
        %v1179 = vunpack.c.h.b16 %v857
        %v1180 = vunpack.c.l.b16 %v858
        %v1181 = vunpack.c.h.b16 %v858
        %v1182 = vunpack.c.l.b16 %v859
        %v1183 = vunpack.c.h.b16 %v859
        %v1184 = vunpack.c.l.b16 %v860
        %v1185 = vunpack.c.h.b16 %v860
        %v1186 = vunpack.c.l.b16 %v861
        %v1187 = vunpack.c.h.b16 %v861
        %v1188 = vunpack.c.l.b16 %v862
        %v1189 = vunpack.c.h.b16 %v862
        %v1190 = vunpack.c.l.b16 %v863
        %v1191 = vunpack.c.h.b16 %v863
        %v1192 = vunpack.c.l.b16 %v864
        %v1193 = vunpack.c.h.b16 %v864
        %v1194 = vunpack.c.l.b16 %v865
        %v1195 = vunpack.c.h.b16 %v865
        %v1196 = vunpack.c.l.b16 %v866
        %v1197 = vunpack.c.h.b16 %v866
        %v1198 = vunpack.c.l.b16 %v867
        %v1199 = vunpack.c.h.b16 %v867
        %v1200 = vunpack.c.l.b16 %v868
        %v1201 = vunpack.c.h.b16 %v868
        %v1202 = vunpack.c.l.b16 %v869
        %v1203 = vunpack.c.h.b16 %v869
        %v1204 = vunpack.c.l.b16 %v870
        %v1205 = vunpack.c.h.b16 %v870
        %v1206 = vunpack.c.l.b16 %v871
        %v1207 = vunpack.c.h.b16 %v871
        %v1208 = vunpack.c.l.b16 %v872
        %v1209 = vunpack.c.h.b16 %v872
        %v1210 = vunpack.c.l.b16 %v873
        %v1211 = vunpack.c.h.b16 %v873
        %v1212 = vunpack.c.l.b16 %v874
        %v1213 = vunpack.c.h.b16 %v874
        %v1214 = vunpack.c.l.b16 %v875
        %v1215 = vunpack.c.h.b16 %v875
        %v1216 = vunpack.c.l.b16 %v876
        %v1217 = vunpack.c.h.b16 %v876
        %v1218 = vunpack.c.l.b16 %v877
        %v1219 = vunpack.c.h.b16 %v877
        %v1220 = vunpack.c.l.b16 %v878
        %v1221 = vunpack.c.h.b16 %v878
        %v1222 = vunpack.c.l.b16 %v879
        %v1223 = vunpack.c.h.b16 %v879
        %v1224 = vunpack.c.l.b16 %v880
        %v1225 = vunpack.c.h.b16 %v880
        %v1226 = vunpack.c.l.b16 %v881
        %v1227 = vunpack.c.h.b16 %v881
        %v1228 = vunpack.c.l.b16 %v882
        %v1229 = vunpack.c.h.b16 %v882
        %v1230 = vunpack.c.l.b16 %v883
        %v1231 = vunpack.c.h.b16 %v883
        %v1232 = vunpack.c.l.b16 %v884
        %v1233 = vunpack.c.h.b16 %v884
        %v1234 = vunpack.c.l.b16 %v885
        %v1235 = vunpack.c.h.b16 %v885
        %v1236 = vunpack.c.l.b16 %v886
        %v1237 = vunpack.c.h.b16 %v886
        %v1238 = vunpack.c.l.b16 %v887
        %v1239 = vunpack.c.h.b16 %v887
        %v1240 = vunpack.c.l.b16 %v888
        %v1241 = vunpack.c.h.b16 %v888
        %v1242 = vunpack.c.l.b16 %v889
        %v1243 = vunpack.c.h.b16 %v889
        %v1244 = vunpack.c.l.b16 %v890
        %v1245 = vunpack.c.h.b16 %v890
        %v1246 = vunpack.c.l.b16 %v891
        %v1247 = vunpack.c.h.b16 %v891
        %v1248 = vunpack.c.l.b16 %v892
        %v1249 = vunpack.c.h.b16 %v892
        %v1250 = vunpack.c.l.b16 %v893
        %v1251 = vunpack.c.h.b16 %v893
        %v1252 = vunpack.c.l.b16 %v894
        %v1253 = vunpack.c.h.b16 %v894
        %v1254 = vunpack.c.l.b16 %v895
        %v1255 = vunpack.c.h.b16 %v895
        %v1256 = vunpack.c.l.b16 %v896
        %v1257 = vunpack.c.h.b16 %v896
        %v1258 = vunpack.c.l.b16 %v897
        %v1259 = vunpack.c.h.b16 %v897
        %v1260 = vunpack.c.l.b16 %v898
        %v1261 = vunpack.c.h.b16 %v898
        %v1262 = vunpack.c.l.b16 %v899
        %v1263 = vunpack.c.h.b16 %v899
        %v1264 = vunpack.c.l.b16 %v900
        %v1265 = vunpack.c.h.b16 %v900
        %v1266 = vunpack.c.l.b16 %v901
        %v1267 = vunpack.c.h.b16 %v901
        %v1268 = vunpack.c.l.b16 %v902
        %v1269 = vunpack.c.h.b16 %v902
        %v1270 = vunpack.c.l.b16 %v903
        %v1271 = vunpack.c.h.b16 %v903
        %v1272 = vunpack.c.l.b16 %v904
        %v1273 = vunpack.c.h.b16 %v904
        %v1274 = vunpack.c.l.b16 %v905
        %v1275 = vunpack.c.h.b16 %v905
        %v1276 = vunpack.c.l.b16 %v906
        %v1277 = vunpack.c.h.b16 %v906
        %v1278 = vunpack.c.l.b16 %v907
        %v1279 = vunpack.c.h.b16 %v907
        %v1280 = vunpack.c.l.b16 %v908
        %v1281 = vunpack.c.h.b16 %v908
        %v1282 = vunpack.c.l.b16 %v909
        %v1283 = vunpack.c.h.b16 %v909
        %v1284 = vunpack.c.l.b16 %v910
        %v1285 = vunpack.c.h.b16 %v910
        %v1286 = vunpack.c.l.b16 %v911
        %v1287 = vunpack.c.h.b16 %v911
        %v1288 = vunpack.c.l.b16 %v912
        %v1289 = vunpack.c.h.b16 %v912
        %v1290 = vunpack.c.l.b16 %v913
        %v1291 = vunpack.c.h.b16 %v913
        %v1292 = vunpack.c.l.b16 %v914
        %v1293 = vunpack.c.h.b16 %v914
        %v1294 = vunpack.c.l.b16 %v915
        %v1295 = vunpack.c.h.b16 %v915
        %v1296 = vunpack.c.l.b16 %v916
        %v1297 = vunpack.c.h.b16 %v916
        %v1298 = vunpack.c.l.b16 %v917
        %v1299 = vunpack.c.h.b16 %v917
        %v1300 = vunpack.c.l.b16 %v918
        %v1301 = vunpack.c.h.b16 %v918
        %v1302 = vunpack.c.l.b16 %v919
        %v1303 = vunpack.c.h.b16 %v919
        %v1304 = vunpack.c.l.b16 %v920
        %v1305 = vunpack.c.h.b16 %v920
        %v1306 = vunpack.c.l.b16 %v921
        %v1307 = vunpack.c.h.b16 %v921
        %v1308 = vunpack.c.l.b16 %v922
        %v1309 = vunpack.c.h.b16 %v922
        %v1310 = vunpack.c.l.b16 %v923
        %v1311 = vunpack.c.h.b16 %v923
        %v1312 = vunpack.c.l.b16 %v924
        %v1313 = vunpack.c.h.b16 %v924
        %v1314 = vunpack.c.l.b16 %v925
        %v1315 = vunpack.c.h.b16 %v925
        %v1316 = vunpack.c.l.b16 %v926
        %v1317 = vunpack.c.h.b16 %v926
        %v1318 = vunpack.c.l.b16 %v927
        %v1319 = vunpack.c.h.b16 %v927
        %v1320 = vunpack.c.l.b16 %v928
        %v1321 = vunpack.c.h.b16 %v928
        %v1322 = vunpack.c.l.b16 %v929
        %v1323 = vunpack.c.h.b16 %v929
        %v1324 = vunpack.c.l.b16 %v930
        %v1325 = vunpack.c.h.b16 %v930
        %v1326 = vunpack.c.l.b16 %v931
        %v1327 = vunpack.c.h.b16 %v931
        %v1328 = vunpack.c.l.b16 %v932
        %v1329 = vunpack.c.h.b16 %v932
        %v1330 = vunpack.c.l.b16 %v933
        %v1331 = vunpack.c.h.b16 %v933
        %v1332 = vunpack.c.l.b16 %v934
        %v1333 = vunpack.c.h.b16 %v934
        %v1334 = vunpack.c.l.b16 %v935
        %v1335 = vunpack.c.h.b16 %v935
        %v1336 = vunpack.c.l.b16 %v936
        %v1337 = vunpack.c.h.b16 %v936
        %v1338 = vunpack.c.l.b16 %v937
        %v1339 = vunpack.c.h.b16 %v937
        %v1340 = vunpack.c.l.b16 %v938
        %v1341 = vunpack.c.h.b16 %v938
        %v1342 = vunpack.c.l.b16 %v939
        %v1343 = vunpack.c.h.b16 %v939
        %v1344 = vunpack.c.l.b16 %v940
        %v1345 = vunpack.c.h.b16 %v940
        %v1346 = vunpack.c.l.b16 %v941
        %v1347 = vunpack.c.h.b16 %v941
        %v1348 = vunpack.c.l.b16 %v942
        %v1349 = vunpack.c.h.b16 %v942
        %v1350 = vunpack.c.l.b16 %v943
        %v1351 = vunpack.c.h.b16 %v943
        %v1352 = vunpack.c.l.b16 %v944
        %v1353 = vunpack.c.h.b16 %v944
        %v1354 = vunpack.c.l.b16 %v945
        %v1355 = vunpack.c.h.b16 %v945
        %v1356 = vunpack.c.l.b16 %v946
        %v1357 = vunpack.c.h.b16 %v946
        %v1358 = vunpack.c.l.b16 %v947
        %v1359 = vunpack.c.h.b16 %v947
        %v1360 = vunpack.c.l.b16 %v948
        %v1361 = vunpack.c.h.b16 %v948
        %v1362 = vunpack.c.l.b16 %v949
        %v1363 = vunpack.c.h.b16 %v949
        %v1364 = vunpack.c.l.b16 %v950
        %v1365 = vunpack.c.h.b16 %v950
        %v1366 = vunpack.c.l.b16 %v951
        %v1367 = vunpack.c.h.b16 %v951
        %v1368 = vunpack.c.l.b16 %v952
        %v1369 = vunpack.c.h.b16 %v952
        %v1370 = vunpack.c.l.b16 %v953
        %v1371 = vunpack.c.h.b16 %v953
        %v1372 = vunpack.c.l.b16 %v954
        %v1373 = vunpack.c.h.b16 %v954
        %v1374 = vunpack.c.l.b16 %v955
        %v1375 = vunpack.c.h.b16 %v955
        %v1376 = vpack.c.b16 %v1136, %v1120
        %v1377 = vpack.c.b16 %v1137, %v1121
        %v1378 = vpack.c.b16 %v1138, %v1122
        %v1379 = vpack.c.b16 %v1139, %v1123
        %v1380 = vpack.c.b16 %v1140, %v1124
        %v1381 = vpack.c.b16 %v1141, %v1125
        %v1382 = vpack.c.b16 %v1142, %v1126
        %v1383 = vpack.c.b16 %v1143, %v1127
        %v1384 = vpack.c.b16 %v1144, %v1128
        %v1385 = vpack.c.b16 %v1145, %v1129
        %v1386 = vpack.c.b16 %v1146, %v1130
        %v1387 = vpack.c.b16 %v1147, %v1131
        %v1388 = vpack.c.b16 %v1148, %v1132
        %v1389 = vpack.c.b16 %v1149, %v1133
        %v1390 = vpack.c.b16 %v1150, %v1134
        %v1391 = vpack.c.b16 %v1151, %v1135
        %v1392 = vpack.c.b16 %v1168, %v1152
        %v1393 = vpack.c.b16 %v1169, %v1153
        %v1394 = vpack.c.b16 %v1170, %v1154
        %v1395 = vpack.c.b16 %v1171, %v1155
        %v1396 = vpack.c.b16 %v1172, %v1156
        %v1397 = vpack.c.b16 %v1173, %v1157
        %v1398 = vpack.c.b16 %v1174, %v1158
        %v1399 = vpack.c.b16 %v1175, %v1159
        %v1400 = vpack.c.b16 %v1176, %v1160
        %v1401 = vpack.c.b16 %v1177, %v1161
        %v1402 = vpack.c.b16 %v1178, %v1162
        %v1403 = vpack.c.b16 %v1179, %v1163
        %v1404 = vpack.c.b16 %v1180, %v1164
        %v1405 = vpack.c.b16 %v1181, %v1165
        %v1406 = vpack.c.b16 %v1182, %v1166
        %v1407 = vpack.c.b16 %v1183, %v1167
        %v1408 = vpack.c.b16 %v1200, %v1184
        %v1409 = vpack.c.b16 %v1201, %v1185
        %v1410 = vpack.c.b16 %v1202, %v1186
        %v1411 = vpack.c.b16 %v1203, %v1187
        %v1412 = vpack.c.b16 %v1204, %v1188
        %v1413 = vpack.c.b16 %v1205, %v1189
        %v1414 = vpack.c.b16 %v1206, %v1190
        %v1415 = vpack.c.b16 %v1207, %v1191
        %v1416 = vpack.c.b16 %v1208, %v1192
        %v1417 = vpack.c.b16 %v1209, %v1193
        %v1418 = vpack.c.b16 %v1210, %v1194
        %v1419 = vpack.c.b16 %v1211, %v1195
        %v1420 = vpack.c.b16 %v1212, %v1196
        %v1421 = vpack.c.b16 %v1213, %v1197
        %v1422 = vpack.c.b16 %v1214, %v1198
        %v1423 = vpack.c.b16 %v1215, %v1199
        %v1424 = vpack.c.b16 %v1232, %v1216
        %v1425 = vpack.c.b16 %v1233, %v1217
        %v1426 = vpack.c.b16 %v1234, %v1218
        %v1427 = vpack.c.b16 %v1235, %v1219
        %v1428 = vpack.c.b16 %v1236, %v1220
        %v1429 = vpack.c.b16 %v1237, %v1221
        %v1430 = vpack.c.b16 %v1238, %v1222
        %v1431 = vpack.c.b16 %v1239, %v1223
        %v1432 = vpack.c.b16 %v1240, %v1224
        %v1433 = vpack.c.b16 %v1241, %v1225
        %v1434 = vpack.c.b16 %v1242, %v1226
        %v1435 = vpack.c.b16 %v1243, %v1227
        %v1436 = vpack.c.b16 %v1244, %v1228
        %v1437 = vpack.c.b16 %v1245, %v1229
        %v1438 = vpack.c.b16 %v1246, %v1230
        %v1439 = vpack.c.b16 %v1247, %v1231
        %v1440 = vpack.c.b16 %v1264, %v1248
        %v1441 = vpack.c.b16 %v1265, %v1249
        %v1442 = vpack.c.b16 %v1266, %v1250
        %v1443 = vpack.c.b16 %v1267, %v1251
        %v1444 = vpack.c.b16 %v1268, %v1252
        %v1445 = vpack.c.b16 %v1269, %v1253
        %v1446 = vpack.c.b16 %v1270, %v1254
        %v1447 = vpack.c.b16 %v1271, %v1255
        %v1448 = vpack.c.b16 %v1272, %v1256
        %v1449 = vpack.c.b16 %v1273, %v1257
        %v1450 = vpack.c.b16 %v1274, %v1258
        %v1451 = vpack.c.b16 %v1275, %v1259
        %v1452 = vpack.c.b16 %v1276, %v1260
        %v1453 = vpack.c.b16 %v1277, %v1261
        %v1454 = vpack.c.b16 %v1278, %v1262
        %v1455 = vpack.c.b16 %v1279, %v1263
        %v1456 = vpack.c.b16 %v1296, %v1280
        %v1457 = vpack.c.b16 %v1297, %v1281
        %v1458 = vpack.c.b16 %v1298, %v1282
        %v1459 = vpack.c.b16 %v1299, %v1283
        %v1460 = vpack.c.b16 %v1300, %v1284
        %v1461 = vpack.c.b16 %v1301, %v1285
        %v1462 = vpack.c.b16 %v1302, %v1286
        %v1463 = vpack.c.b16 %v1303, %v1287
        %v1464 = vpack.c.b16 %v1304, %v1288
        %v1465 = vpack.c.b16 %v1305, %v1289
        %v1466 = vpack.c.b16 %v1306, %v1290
        %v1467 = vpack.c.b16 %v1307, %v1291
        %v1468 = vpack.c.b16 %v1308, %v1292
        %v1469 = vpack.c.b16 %v1309, %v1293
        %v1470 = vpack.c.b16 %v1310, %v1294
        %v1471 = vpack.c.b16 %v1311, %v1295
        %v1472 = vpack.c.b16 %v1328, %v1312
        %v1473 = vpack.c.b16 %v1329, %v1313
        %v1474 = vpack.c.b16 %v1330, %v1314
        %v1475 = vpack.c.b16 %v1331, %v1315
        %v1476 = vpack.c.b16 %v1332, %v1316
        %v1477 = vpack.c.b16 %v1333, %v1317
        %v1478 = vpack.c.b16 %v1334, %v1318
        %v1479 = vpack.c.b16 %v1335, %v1319
        %v1480 = vpack.c.b16 %v1336, %v1320
        %v1481 = vpack.c.b16 %v1337, %v1321
        %v1482 = vpack.c.b16 %v1338, %v1322
        %v1483 = vpack.c.b16 %v1339, %v1323
        %v1484 = vpack.c.b16 %v1340, %v1324
        %v1485 = vpack.c.b16 %v1341, %v1325
        %v1486 = vpack.c.b16 %v1342, %v1326
        %v1487 = vpack.c.b16 %v1343, %v1327
        %v1488 = vpack.c.b16 %v1360, %v1344
        %v1489 = vpack.c.b16 %v1361, %v1345
        %v1490 = vpack.c.b16 %v1362, %v1346
        %v1491 = vpack.c.b16 %v1363, %v1347
        %v1492 = vpack.c.b16 %v1364, %v1348
        %v1493 = vpack.c.b16 %v1365, %v1349
        %v1494 = vpack.c.b16 %v1366, %v1350
        %v1495 = vpack.c.b16 %v1367, %v1351
        %v1496 = vpack.c.b16 %v1368, %v1352
        %v1497 = vpack.c.b16 %v1369, %v1353
        %v1498 = vpack.c.b16 %v1370, %v1354
        %v1499 = vpack.c.b16 %v1371, %v1355
        %v1500 = vpack.c.b16 %v1372, %v1356
        %v1501 = vpack.c.b16 %v1373, %v1357
        %v1502 = vpack.c.b16 %v1374, %v1358
        %v1503 = vpack.c.b16 %v1375, %v1359
        %1632 = vmatpush.bf16.msra.mxu0 %v1488
        %1633 = vmatpush.bf16.msra.mxu0 %v1472
        %1634 = vmatpush.bf16.msra.mxu0 %v1456
        %1635 = vmatpush.bf16.msra.mxu0 %v1440
        %1636 = vmatpush.bf16.msra.mxu0 %v1424
        %1637 = vmatpush.bf16.msra.mxu0 %v1408
        %1638 = vmatpush.bf16.msra.mxu0 %v1392
        %1639 = vmatpush.bf16.msra.mxu0 %v1376
        %1640 = vmatmul.bf16.gmra.mxu0 %v827
        %v1641 = vpop.f32.mrf.mxu0
        %v1642 = vadd.f32 %v960, %v1641
        %v1643 = vpop.f32.mrf.mxu0
        %1644 = vdwg.mxu0
        %1645 = vmatpush.bf16.msra.mxu0 %v1489
        %1646 = vmatpush.bf16.msra.mxu0 %v1473
        %1647 = vmatpush.bf16.msra.mxu0 %v1457
        %1648 = vmatpush.bf16.msra.mxu0 %v1441
        %1649 = vmatpush.bf16.msra.mxu0 %v1425
        %1650 = vmatpush.bf16.msra.mxu0 %v1409
        %1651 = vmatpush.bf16.msra.mxu0 %v1393
        %1652 = vmatpush.bf16.msra.mxu0 %v1377
        %1653 = vmatmul.bf16.gmra.mxu0 %v827
        %v1654 = vpop.f32.mrf.mxu0
        %v1655 = vadd.f32 %v961, %v1654
        %v1656 = vpop.f32.mrf.mxu0
        %1657 = vdwg.mxu0
        %1658 = vmatpush.bf16.msra.mxu0 %v1490
        %1659 = vmatpush.bf16.msra.mxu0 %v1474
        %1660 = vmatpush.bf16.msra.mxu0 %v1458
        %1661 = vmatpush.bf16.msra.mxu0 %v1442
        %1662 = vmatpush.bf16.msra.mxu0 %v1426
        %1663 = vmatpush.bf16.msra.mxu0 %v1410
        %1664 = vmatpush.bf16.msra.mxu0 %v1394
        %1665 = vmatpush.bf16.msra.mxu0 %v1378
        %1666 = vmatmul.bf16.gmra.mxu0 %v827
        %v1667 = vpop.f32.mrf.mxu0
        %v1668 = vadd.f32 %v962, %v1667
        %v1669 = vpop.f32.mrf.mxu0
        %1670 = vdwg.mxu0
        %1671 = vmatpush.bf16.msra.mxu0 %v1491
        %1672 = vmatpush.bf16.msra.mxu0 %v1475
        %1673 = vmatpush.bf16.msra.mxu0 %v1459
        %1674 = vmatpush.bf16.msra.mxu0 %v1443
        %1675 = vmatpush.bf16.msra.mxu0 %v1427
        %1676 = vmatpush.bf16.msra.mxu0 %v1411
        %1677 = vmatpush.bf16.msra.mxu0 %v1395
        %1678 = vmatpush.bf16.msra.mxu0 %v1379
        %1679 = vmatmul.bf16.gmra.mxu0 %v827
        %v1680 = vpop.f32.mrf.mxu0
        %v1681 = vadd.f32 %v963, %v1680
        %v1682 = vpop.f32.mrf.mxu0
        %1683 = vdwg.mxu0
        %1684 = vmatpush.bf16.msra.mxu0 %v1492
        %1685 = vmatpush.bf16.msra.mxu0 %v1476
        %1686 = vmatpush.bf16.msra.mxu0 %v1460
        %1687 = vmatpush.bf16.msra.mxu0 %v1444
        %1688 = vmatpush.bf16.msra.mxu0 %v1428
        %1689 = vmatpush.bf16.msra.mxu0 %v1412
        %1690 = vmatpush.bf16.msra.mxu0 %v1396
        %1691 = vmatpush.bf16.msra.mxu0 %v1380
        %1692 = vmatmul.bf16.gmra.mxu0 %v827
        %v1693 = vpop.f32.mrf.mxu0
        %v1694 = vadd.f32 %v964, %v1693
        %v1695 = vpop.f32.mrf.mxu0
        %1696 = vdwg.mxu0
        %1697 = vmatpush.bf16.msra.mxu0 %v1493
        %1698 = vmatpush.bf16.msra.mxu0 %v1477
        %1699 = vmatpush.bf16.msra.mxu0 %v1461
        %1700 = vmatpush.bf16.msra.mxu0 %v1445
        %1701 = vmatpush.bf16.msra.mxu0 %v1429
        %1702 = vmatpush.bf16.msra.mxu0 %v1413
        %1703 = vmatpush.bf16.msra.mxu0 %v1397
        %1704 = vmatpush.bf16.msra.mxu0 %v1381
        %1705 = vmatmul.bf16.gmra.mxu0 %v827
        %v1706 = vpop.f32.mrf.mxu0
        %v1707 = vadd.f32 %v965, %v1706
        %v1708 = vpop.f32.mrf.mxu0
        %1709 = vdwg.mxu0
        %1710 = vmatpush.bf16.msra.mxu0 %v1494
        %1711 = vmatpush.bf16.msra.mxu0 %v1478
        %1712 = vmatpush.bf16.msra.mxu0 %v1462
        %1713 = vmatpush.bf16.msra.mxu0 %v1446
        %1714 = vmatpush.bf16.msra.mxu0 %v1430
        %1715 = vmatpush.bf16.msra.mxu0 %v1414
        %1716 = vmatpush.bf16.msra.mxu0 %v1398
        %1717 = vmatpush.bf16.msra.mxu0 %v1382
        %1718 = vmatmul.bf16.gmra.mxu0 %v827
        %v1719 = vpop.f32.mrf.mxu0
        %v1720 = vadd.f32 %v966, %v1719
        %v1721 = vpop.f32.mrf.mxu0
        %1722 = vdwg.mxu0
        %1723 = vmatpush.bf16.msra.mxu0 %v1495
        %1724 = vmatpush.bf16.msra.mxu0 %v1479
        %1725 = vmatpush.bf16.msra.mxu0 %v1463
        %1726 = vmatpush.bf16.msra.mxu0 %v1447
        %1727 = vmatpush.bf16.msra.mxu0 %v1431
        %1728 = vmatpush.bf16.msra.mxu0 %v1415
        %1729 = vmatpush.bf16.msra.mxu0 %v1399
        %1730 = vmatpush.bf16.msra.mxu0 %v1383
        %1731 = vmatmul.bf16.gmra.mxu0 %v827
        %v1732 = vpop.f32.mrf.mxu0
        %v1733 = vadd.f32 %v967, %v1732
        %v1734 = vpop.f32.mrf.mxu0
        %1735 = vdwg.mxu0
        %1736 = vmatpush.bf16.msra.mxu0 %v1496
        %1737 = vmatpush.bf16.msra.mxu0 %v1480
        %1738 = vmatpush.bf16.msra.mxu0 %v1464
        %1739 = vmatpush.bf16.msra.mxu0 %v1448
        %1740 = vmatpush.bf16.msra.mxu0 %v1432
        %1741 = vmatpush.bf16.msra.mxu0 %v1416
        %1742 = vmatpush.bf16.msra.mxu0 %v1400
        %1743 = vmatpush.bf16.msra.mxu0 %v1384
        %1744 = vmatmul.bf16.gmra.mxu0 %v827
        %v1745 = vpop.f32.mrf.mxu0
        %v1746 = vadd.f32 %v968, %v1745
        %v1747 = vpop.f32.mrf.mxu0
        %1748 = vdwg.mxu0
        %1749 = vmatpush.bf16.msra.mxu0 %v1497
        %1750 = vmatpush.bf16.msra.mxu0 %v1481
        %1751 = vmatpush.bf16.msra.mxu0 %v1465
        %1752 = vmatpush.bf16.msra.mxu0 %v1449
        %1753 = vmatpush.bf16.msra.mxu0 %v1433
        %1754 = vmatpush.bf16.msra.mxu0 %v1417
        %1755 = vmatpush.bf16.msra.mxu0 %v1401
        %1756 = vmatpush.bf16.msra.mxu0 %v1385
        %1757 = vmatmul.bf16.gmra.mxu0 %v827
        %v1758 = vpop.f32.mrf.mxu0
        %v1759 = vadd.f32 %v969, %v1758
        %v1760 = vpop.f32.mrf.mxu0
        %1761 = vdwg.mxu0
        %1762 = vmatpush.bf16.msra.mxu0 %v1498
        %1763 = vmatpush.bf16.msra.mxu0 %v1482
        %1764 = vmatpush.bf16.msra.mxu0 %v1466
        %1765 = vmatpush.bf16.msra.mxu0 %v1450
        %1766 = vmatpush.bf16.msra.mxu0 %v1434
        %1767 = vmatpush.bf16.msra.mxu0 %v1418
        %1768 = vmatpush.bf16.msra.mxu0 %v1402
        %1769 = vmatpush.bf16.msra.mxu0 %v1386
        %1770 = vmatmul.bf16.gmra.mxu0 %v827
        %v1771 = vpop.f32.mrf.mxu0
        %v1772 = vadd.f32 %v970, %v1771
        %v1773 = vpop.f32.mrf.mxu0
        %1774 = vdwg.mxu0
        %1775 = vmatpush.bf16.msra.mxu0 %v1499
        %1776 = vmatpush.bf16.msra.mxu0 %v1483
        %1777 = vmatpush.bf16.msra.mxu0 %v1467
        %1778 = vmatpush.bf16.msra.mxu0 %v1451
        %1779 = vmatpush.bf16.msra.mxu0 %v1435
        %1780 = vmatpush.bf16.msra.mxu0 %v1419
        %1781 = vmatpush.bf16.msra.mxu0 %v1403
        %1782 = vmatpush.bf16.msra.mxu0 %v1387
        %1783 = vmatmul.bf16.gmra.mxu0 %v827
        %v1784 = vpop.f32.mrf.mxu0
        %v1785 = vadd.f32 %v971, %v1784
        %v1786 = vpop.f32.mrf.mxu0
        %1787 = vdwg.mxu0
        %1788 = vmatpush.bf16.msra.mxu0 %v1500
        %1789 = vmatpush.bf16.msra.mxu0 %v1484
        %1790 = vmatpush.bf16.msra.mxu0 %v1468
        %1791 = vmatpush.bf16.msra.mxu0 %v1452
        %1792 = vmatpush.bf16.msra.mxu0 %v1436
        %1793 = vmatpush.bf16.msra.mxu0 %v1420
        %1794 = vmatpush.bf16.msra.mxu0 %v1404
        %1795 = vmatpush.bf16.msra.mxu0 %v1388
        %1796 = vmatmul.bf16.gmra.mxu0 %v827
        %v1797 = vpop.f32.mrf.mxu0
        %v1798 = vadd.f32 %v972, %v1797
        %v1799 = vpop.f32.mrf.mxu0
        %1800 = vdwg.mxu0
        %1801 = vmatpush.bf16.msra.mxu0 %v1501
        %1802 = vmatpush.bf16.msra.mxu0 %v1485
        %1803 = vmatpush.bf16.msra.mxu0 %v1469
        %1804 = vmatpush.bf16.msra.mxu0 %v1453
        %1805 = vmatpush.bf16.msra.mxu0 %v1437
        %1806 = vmatpush.bf16.msra.mxu0 %v1421
        %1807 = vmatpush.bf16.msra.mxu0 %v1405
        %1808 = vmatpush.bf16.msra.mxu0 %v1389
        %1809 = vmatmul.bf16.gmra.mxu0 %v827
        %v1810 = vpop.f32.mrf.mxu0
        %v1811 = vadd.f32 %v973, %v1810
        %v1812 = vpop.f32.mrf.mxu0
        %1813 = vdwg.mxu0
        %1814 = vmatpush.bf16.msra.mxu0 %v1502
        %1815 = vmatpush.bf16.msra.mxu0 %v1486
        %1816 = vmatpush.bf16.msra.mxu0 %v1470
        %1817 = vmatpush.bf16.msra.mxu0 %v1454
        %1818 = vmatpush.bf16.msra.mxu0 %v1438
        %1819 = vmatpush.bf16.msra.mxu0 %v1422
        %1820 = vmatpush.bf16.msra.mxu0 %v1406
        %1821 = vmatpush.bf16.msra.mxu0 %v1390
        %1822 = vmatmul.bf16.gmra.mxu0 %v827
        %v1823 = vpop.f32.mrf.mxu0
        %v1824 = vadd.f32 %v974, %v1823
        %v1825 = vpop.f32.mrf.mxu0
        %1826 = vdwg.mxu0
        %1827 = vmatpush.bf16.msra.mxu0 %v1503
        %1828 = vmatpush.bf16.msra.mxu0 %v1487
        %1829 = vmatpush.bf16.msra.mxu0 %v1471
        %1830 = vmatpush.bf16.msra.mxu0 %v1455
        %1831 = vmatpush.bf16.msra.mxu0 %v1439
        %1832 = vmatpush.bf16.msra.mxu0 %v1423
        %1833 = vmatpush.bf16.msra.mxu0 %v1407
        %1834 = vmatpush.bf16.msra.mxu0 %v1391
        %1835 = vmatmul.bf16.gmra.mxu0 %v827
        %v1836 = vpop.f32.mrf.mxu0
        %v1837 = vadd.f32 %v975, %v1836
        %v1838 = vpop.f32.mrf.mxu0
        %1839 = vdwg.mxu0
        %v1840 = vmax.f32 %v1642, 0.0
        %v1841 = vmax.f32 %v1655, 0.0
        %v1842 = vmax.f32 %v1668, 0.0
        %v1843 = vmax.f32 %v1681, 0.0
        %v1844 = vmax.f32 %v1694, 0.0
        %v1845 = vmax.f32 %v1707, 0.0
        %v1846 = vmax.f32 %v1720, 0.0
        %v1847 = vmax.f32 %v1733, 0.0
        %v1848 = vmax.f32 %v1746, 0.0
        %v1849 = vmax.f32 %v1759, 0.0
        %v1850 = vmax.f32 %v1772, 0.0
        %v1851 = vmax.f32 %v1785, 0.0
        %v1852 = vmax.f32 %v1798, 0.0
        %v1853 = vmax.f32 %v1811, 0.0
        %v1854 = vmax.f32 %v1824, 0.0
        %v1855 = vmax.f32 %v1837, 0.0
        %v1856 = vpack.c.bf16 %v1840, %v1840
        %v1857 = vpack.c.bf16 %v1841, %v1841
        %v1858 = vpack.c.bf16 %v1842, %v1842
        %v1859 = vpack.c.bf16 %v1843, %v1843
        %v1860 = vpack.c.bf16 %v1844, %v1844
        %v1861 = vpack.c.bf16 %v1845, %v1845
        %v1862 = vpack.c.bf16 %v1846, %v1846
        %v1863 = vpack.c.bf16 %v1847, %v1847
        %v1864 = vpack.c.bf16 %v1848, %v1848
        %v1865 = vpack.c.bf16 %v1849, %v1849
        %v1866 = vpack.c.bf16 %v1850, %v1850
        %v1867 = vpack.c.bf16 %v1851, %v1851
        %v1868 = vpack.c.bf16 %v1852, %v1852
        %v1869 = vpack.c.bf16 %v1853, %v1853
        %v1870 = vpack.c.bf16 %v1854, %v1854
        %v1871 = vpack.c.bf16 %v1855, %v1855
        %v1872 = vld [vmem:[#allocation7] sm:$0xf]
        %v1873 = vld [vmem:[#allocation7 + $0x4] sm:$0xf]
        %v1874 = vld [vmem:[#allocation7 + $0x8] sm:$0xf]
        %v1875 = vld [vmem:[#allocation7 + $0xc] sm:$0xf]
        %v1876 = vld [vmem:[#allocation7 + $0x10] sm:$0xf]
        %v1877 = vld [vmem:[#allocation7 + $0x14] sm:$0xf]
        %v1878 = vld [vmem:[#allocation7 + $0x18] sm:$0xf]
        %v1879 = vld [vmem:[#allocation7 + $0x1c] sm:$0xf]
        %v1880 = vld [vmem:[#allocation7 + $0x20] sm:$0xf]
        %v1881 = vld [vmem:[#allocation7 + $0x24] sm:$0xf]
        %v1882 = vld [vmem:[#allocation7 + $0x28] sm:$0xf]
        %v1883 = vld [vmem:[#allocation7 + $0x2c] sm:$0xf]
        %v1884 = vld [vmem:[#allocation7 + $0x30] sm:$0xf]
        %v1885 = vld [vmem:[#allocation7 + $0x34] sm:$0xf]
        %v1886 = vld [vmem:[#allocation7 + $0x38] sm:$0xf]
        %v1887 = vld [vmem:[#allocation7 + $0x3c] sm:$0xf]
        %v1888 = vld [vmem:[#allocation7 + $0x40] sm:$0xf]
        %v1889 = vld [vmem:[#allocation7 + $0x44] sm:$0xf]
        %v1890 = vld [vmem:[#allocation7 + $0x48] sm:$0xf]
        %v1891 = vld [vmem:[#allocation7 + $0x4c] sm:$0xf]
        %v1892 = vld [vmem:[#allocation7 + $0x50] sm:$0xf]
        %v1893 = vld [vmem:[#allocation7 + $0x54] sm:$0xf]
        %v1894 = vld [vmem:[#allocation7 + $0x58] sm:$0xf]
        %v1895 = vld [vmem:[#allocation7 + $0x5c] sm:$0xf]
        %v1896 = vld [vmem:[#allocation7 + $0x60] sm:$0xf]
        %v1897 = vld [vmem:[#allocation7 + $0x64] sm:$0xf]
        %v1898 = vld [vmem:[#allocation7 + $0x68] sm:$0xf]
        %v1899 = vld [vmem:[#allocation7 + $0x6c] sm:$0xf]
        %v1900 = vld [vmem:[#allocation7 + $0x70] sm:$0xf]
        %v1901 = vld [vmem:[#allocation7 + $0x74] sm:$0xf]
        %v1902 = vld [vmem:[#allocation7 + $0x78] sm:$0xf]
        %v1903 = vld [vmem:[#allocation7 + $0x7c] sm:$0xf]
        %v1904 = vld [vmem:[#allocation7 + $0x80] sm:$0xf]
        %v1905 = vld [vmem:[#allocation7 + $0x84] sm:$0xf]
        %v1906 = vld [vmem:[#allocation7 + $0x88] sm:$0xf]
        %v1907 = vld [vmem:[#allocation7 + $0x8c] sm:$0xf]
        %v1908 = vld [vmem:[#allocation7 + $0x90] sm:$0xf]
        %v1909 = vld [vmem:[#allocation7 + $0x94] sm:$0xf]
        %v1910 = vld [vmem:[#allocation7 + $0x98] sm:$0xf]
        %v1911 = vld [vmem:[#allocation7 + $0x9c] sm:$0xf]
        %v1912 = vld [vmem:[#allocation7 + $0xa0] sm:$0xf]
        %v1913 = vld [vmem:[#allocation7 + $0xa4] sm:$0xf]
        %v1914 = vld [vmem:[#allocation7 + $0xa8] sm:$0xf]
        %v1915 = vld [vmem:[#allocation7 + $0xac] sm:$0xf]
        %v1916 = vld [vmem:[#allocation7 + $0xb0] sm:$0xf]
        %v1917 = vld [vmem:[#allocation7 + $0xb4] sm:$0xf]
        %v1918 = vld [vmem:[#allocation7 + $0xb8] sm:$0xf]
        %v1919 = vld [vmem:[#allocation7 + $0xbc] sm:$0xf]
        %v1920 = vld [vmem:[#allocation7 + $0xc0] sm:$0xf]
        %v1921 = vld [vmem:[#allocation7 + $0xc4] sm:$0xf]
        %v1922 = vld [vmem:[#allocation7 + $0xc8] sm:$0xf]
        %v1923 = vld [vmem:[#allocation7 + $0xcc] sm:$0xf]
        %v1924 = vld [vmem:[#allocation7 + $0xd0] sm:$0xf]
        %v1925 = vld [vmem:[#allocation7 + $0xd4] sm:$0xf]
        %v1926 = vld [vmem:[#allocation7 + $0xd8] sm:$0xf]
        %v1927 = vld [vmem:[#allocation7 + $0xdc] sm:$0xf]
        %v1928 = vld [vmem:[#allocation7 + $0xe0] sm:$0xf]
        %v1929 = vld [vmem:[#allocation7 + $0xe4] sm:$0xf]
        %v1930 = vld [vmem:[#allocation7 + $0xe8] sm:$0xf]
        %v1931 = vld [vmem:[#allocation7 + $0xec] sm:$0xf]
        %v1932 = vld [vmem:[#allocation7 + $0xf0] sm:$0xf]
        %v1933 = vld [vmem:[#allocation7 + $0xf4] sm:$0xf]
        %v1934 = vld [vmem:[#allocation7 + $0xf8] sm:$0xf]
        %v1935 = vld [vmem:[#allocation7 + $0xfc] sm:$0xf]
        %v1936 = vld [vmem:[#allocation7 + $0x100] sm:$0xf]
        %v1937 = vld [vmem:[#allocation7 + $0x104] sm:$0xf]
        %v1938 = vld [vmem:[#allocation7 + $0x108] sm:$0xf]
        %v1939 = vld [vmem:[#allocation7 + $0x10c] sm:$0xf]
        %v1940 = vld [vmem:[#allocation7 + $0x110] sm:$0xf]
        %v1941 = vld [vmem:[#allocation7 + $0x114] sm:$0xf]
        %v1942 = vld [vmem:[#allocation7 + $0x118] sm:$0xf]
        %v1943 = vld [vmem:[#allocation7 + $0x11c] sm:$0xf]
        %v1944 = vld [vmem:[#allocation7 + $0x120] sm:$0xf]
        %v1945 = vld [vmem:[#allocation7 + $0x124] sm:$0xf]
        %v1946 = vld [vmem:[#allocation7 + $0x128] sm:$0xf]
        %v1947 = vld [vmem:[#allocation7 + $0x12c] sm:$0xf]
        %v1948 = vld [vmem:[#allocation7 + $0x130] sm:$0xf]
        %v1949 = vld [vmem:[#allocation7 + $0x134] sm:$0xf]
        %v1950 = vld [vmem:[#allocation7 + $0x138] sm:$0xf]
        %v1951 = vld [vmem:[#allocation7 + $0x13c] sm:$0xf]
        %v1952 = vld [vmem:[#allocation7 + $0x140] sm:$0xf]
        %v1953 = vld [vmem:[#allocation7 + $0x144] sm:$0xf]
        %v1954 = vld [vmem:[#allocation7 + $0x148] sm:$0xf]
        %v1955 = vld [vmem:[#allocation7 + $0x14c] sm:$0xf]
        %v1956 = vld [vmem:[#allocation7 + $0x150] sm:$0xf]
        %v1957 = vld [vmem:[#allocation7 + $0x154] sm:$0xf]
        %v1958 = vld [vmem:[#allocation7 + $0x158] sm:$0xf]
        %v1959 = vld [vmem:[#allocation7 + $0x15c] sm:$0xf]
        %v1960 = vld [vmem:[#allocation7 + $0x160] sm:$0xf]
        %v1961 = vld [vmem:[#allocation7 + $0x164] sm:$0xf]
        %v1962 = vld [vmem:[#allocation7 + $0x168] sm:$0xf]
        %v1963 = vld [vmem:[#allocation7 + $0x16c] sm:$0xf]
        %v1964 = vld [vmem:[#allocation7 + $0x170] sm:$0xf]
        %v1965 = vld [vmem:[#allocation7 + $0x174] sm:$0xf]
        %v1966 = vld [vmem:[#allocation7 + $0x178] sm:$0xf]
        %v1967 = vld [vmem:[#allocation7 + $0x17c] sm:$0xf]
        %v1968 = vld [vmem:[#allocation7 + $0x180] sm:$0xf]
        %v1969 = vld [vmem:[#allocation7 + $0x184] sm:$0xf]
        %v1970 = vld [vmem:[#allocation7 + $0x188] sm:$0xf]
        %v1971 = vld [vmem:[#allocation7 + $0x18c] sm:$0xf]
        %v1972 = vld [vmem:[#allocation7 + $0x190] sm:$0xf]
        %v1973 = vld [vmem:[#allocation7 + $0x194] sm:$0xf]
        %v1974 = vld [vmem:[#allocation7 + $0x198] sm:$0xf]
        %v1975 = vld [vmem:[#allocation7 + $0x19c] sm:$0xf]
        %v1976 = vld [vmem:[#allocation7 + $0x1a0] sm:$0xf]
        %v1977 = vld [vmem:[#allocation7 + $0x1a4] sm:$0xf]
        %v1978 = vld [vmem:[#allocation7 + $0x1a8] sm:$0xf]
        %v1979 = vld [vmem:[#allocation7 + $0x1ac] sm:$0xf]
        %v1980 = vld [vmem:[#allocation7 + $0x1b0] sm:$0xf]
        %v1981 = vld [vmem:[#allocation7 + $0x1b4] sm:$0xf]
        %v1982 = vld [vmem:[#allocation7 + $0x1b8] sm:$0xf]
        %v1983 = vld [vmem:[#allocation7 + $0x1bc] sm:$0xf]
        %v1984 = vld [vmem:[#allocation7 + $0x1c0] sm:$0xf]
        %v1985 = vld [vmem:[#allocation7 + $0x1c4] sm:$0xf]
        %v1986 = vld [vmem:[#allocation7 + $0x1c8] sm:$0xf]
        %v1987 = vld [vmem:[#allocation7 + $0x1cc] sm:$0xf]
        %v1988 = vld [vmem:[#allocation7 + $0x1d0] sm:$0xf]
        %v1989 = vld [vmem:[#allocation7 + $0x1d4] sm:$0xf]
        %v1990 = vld [vmem:[#allocation7 + $0x1d8] sm:$0xf]
        %v1991 = vld [vmem:[#allocation7 + $0x1dc] sm:$0xf]
        %v1992 = vld [vmem:[#allocation7 + $0x1e0] sm:$0xf]
        %v1993 = vld [vmem:[#allocation7 + $0x1e4] sm:$0xf]
        %v1994 = vld [vmem:[#allocation7 + $0x1e8] sm:$0xf]
        %v1995 = vld [vmem:[#allocation7 + $0x1ec] sm:$0xf]
        %v1996 = vld [vmem:[#allocation7 + $0x1f0] sm:$0xf]
        %v1997 = vld [vmem:[#allocation7 + $0x1f4] sm:$0xf]
        %v1998 = vld [vmem:[#allocation7 + $0x1f8] sm:$0xf]
        %v1999 = vld [vmem:[#allocation7 + $0x1fc] sm:$0xf]
        %v2000 = vld [vmem:[#allocation7 + $0x200] sm:$0xf]
        %v2001 = vld [vmem:[#allocation7 + $0x204] sm:$0xf]
        %v2002 = vld [vmem:[#allocation7 + $0x208] sm:$0xf]
        %v2003 = vld [vmem:[#allocation7 + $0x20c] sm:$0xf]
        %v2004 = vld [vmem:[#allocation7 + $0x210] sm:$0xf]
        %v2005 = vld [vmem:[#allocation7 + $0x214] sm:$0xf]
        %v2006 = vld [vmem:[#allocation7 + $0x218] sm:$0xf]
        %v2007 = vld [vmem:[#allocation7 + $0x21c] sm:$0xf]
        %v2008 = vld [vmem:[#allocation7 + $0x220] sm:$0xf]
        %v2009 = vld [vmem:[#allocation7 + $0x224] sm:$0xf]
        %v2010 = vld [vmem:[#allocation7 + $0x228] sm:$0xf]
        %v2011 = vld [vmem:[#allocation7 + $0x22c] sm:$0xf]
        %v2012 = vld [vmem:[#allocation7 + $0x230] sm:$0xf]
        %v2013 = vld [vmem:[#allocation7 + $0x234] sm:$0xf]
        %v2014 = vld [vmem:[#allocation7 + $0x238] sm:$0xf]
        %v2015 = vld [vmem:[#allocation7 + $0x23c] sm:$0xf]
        %v2016 = vld [vmem:[#allocation7 + $0x240] sm:$0xf]
        %v2017 = vld [vmem:[#allocation7 + $0x244] sm:$0xf]
        %v2018 = vld [vmem:[#allocation7 + $0x248] sm:$0xf]
        %v2019 = vld [vmem:[#allocation7 + $0x24c] sm:$0xf]
        %v2020 = vld [vmem:[#allocation7 + $0x250] sm:$0xf]
        %v2021 = vld [vmem:[#allocation7 + $0x254] sm:$0xf]
        %v2022 = vld [vmem:[#allocation7 + $0x258] sm:$0xf]
        %v2023 = vld [vmem:[#allocation7 + $0x25c] sm:$0xf]
        %v2024 = vld [vmem:[#allocation7 + $0x260] sm:$0xf]
        %v2025 = vld [vmem:[#allocation7 + $0x264] sm:$0xf]
        %v2026 = vld [vmem:[#allocation7 + $0x268] sm:$0xf]
        %v2027 = vld [vmem:[#allocation7 + $0x26c] sm:$0xf]
        %v2028 = vld [vmem:[#allocation7 + $0x270] sm:$0xf]
        %v2029 = vld [vmem:[#allocation7 + $0x274] sm:$0xf]
        %v2030 = vld [vmem:[#allocation7 + $0x278] sm:$0xf]
        %v2031 = vld [vmem:[#allocation7 + $0x27c] sm:$0xf]
        %v2032 = vld [vmem:[#allocation7 + $0x280] sm:$0xf]
        %v2033 = vld [vmem:[#allocation7 + $0x284] sm:$0xf]
        %v2034 = vld [vmem:[#allocation7 + $0x288] sm:$0xf]
        %v2035 = vld [vmem:[#allocation7 + $0x28c] sm:$0xf]
        %v2036 = vld [vmem:[#allocation7 + $0x290] sm:$0xf]
        %v2037 = vld [vmem:[#allocation7 + $0x294] sm:$0xf]
        %v2038 = vld [vmem:[#allocation7 + $0x298] sm:$0xf]
        %v2039 = vld [vmem:[#allocation7 + $0x29c] sm:$0xf]
        %v2040 = vld [vmem:[#allocation7 + $0x2a0] sm:$0xf]
        %v2041 = vld [vmem:[#allocation7 + $0x2a4] sm:$0xf]
        %v2042 = vld [vmem:[#allocation7 + $0x2a8] sm:$0xf]
        %v2043 = vld [vmem:[#allocation7 + $0x2ac] sm:$0xf]
        %v2044 = vld [vmem:[#allocation7 + $0x2b0] sm:$0xf]
        %v2045 = vld [vmem:[#allocation7 + $0x2b4] sm:$0xf]
        %v2046 = vld [vmem:[#allocation7 + $0x2b8] sm:$0xf]
        %v2047 = vld [vmem:[#allocation7 + $0x2bc] sm:$0xf]
        %v2048 = vld [vmem:[#allocation7 + $0x2c0] sm:$0xf]
        %v2049 = vld [vmem:[#allocation7 + $0x2c4] sm:$0xf]
        %v2050 = vld [vmem:[#allocation7 + $0x2c8] sm:$0xf]
        %v2051 = vld [vmem:[#allocation7 + $0x2cc] sm:$0xf]
        %v2052 = vld [vmem:[#allocation7 + $0x2d0] sm:$0xf]
        %v2053 = vld [vmem:[#allocation7 + $0x2d4] sm:$0xf]
        %v2054 = vld [vmem:[#allocation7 + $0x2d8] sm:$0xf]
        %v2055 = vld [vmem:[#allocation7 + $0x2dc] sm:$0xf]
        %v2056 = vld [vmem:[#allocation7 + $0x2e0] sm:$0xf]
        %v2057 = vld [vmem:[#allocation7 + $0x2e4] sm:$0xf]
        %v2058 = vld [vmem:[#allocation7 + $0x2e8] sm:$0xf]
        %v2059 = vld [vmem:[#allocation7 + $0x2ec] sm:$0xf]
        %v2060 = vld [vmem:[#allocation7 + $0x2f0] sm:$0xf]
        %v2061 = vld [vmem:[#allocation7 + $0x2f4] sm:$0xf]
        %v2062 = vld [vmem:[#allocation7 + $0x2f8] sm:$0xf]
        %v2063 = vld [vmem:[#allocation7 + $0x2fc] sm:$0xf]
        %v2064 = vld [vmem:[#allocation7 + $0x300] sm:$0xf]
        %v2065 = vld [vmem:[#allocation7 + $0x304] sm:$0xf]
        %v2066 = vld [vmem:[#allocation7 + $0x308] sm:$0xf]
        %v2067 = vld [vmem:[#allocation7 + $0x30c] sm:$0xf]
        %v2068 = vld [vmem:[#allocation7 + $0x310] sm:$0xf]
        %v2069 = vld [vmem:[#allocation7 + $0x314] sm:$0xf]
        %v2070 = vld [vmem:[#allocation7 + $0x318] sm:$0xf]
        %v2071 = vld [vmem:[#allocation7 + $0x31c] sm:$0xf]
        %v2072 = vld [vmem:[#allocation7 + $0x320] sm:$0xf]
        %v2073 = vld [vmem:[#allocation7 + $0x324] sm:$0xf]
        %v2074 = vld [vmem:[#allocation7 + $0x328] sm:$0xf]
        %v2075 = vld [vmem:[#allocation7 + $0x32c] sm:$0xf]
        %v2076 = vld [vmem:[#allocation7 + $0x330] sm:$0xf]
        %v2077 = vld [vmem:[#allocation7 + $0x334] sm:$0xf]
        %v2078 = vld [vmem:[#allocation7 + $0x338] sm:$0xf]
        %v2079 = vld [vmem:[#allocation7 + $0x33c] sm:$0xf]
        %v2080 = vld [vmem:[#allocation7 + $0x340] sm:$0xf]
        %v2081 = vld [vmem:[#allocation7 + $0x344] sm:$0xf]
        %v2082 = vld [vmem:[#allocation7 + $0x348] sm:$0xf]
        %v2083 = vld [vmem:[#allocation7 + $0x34c] sm:$0xf]
        %v2084 = vld [vmem:[#allocation7 + $0x350] sm:$0xf]
        %v2085 = vld [vmem:[#allocation7 + $0x354] sm:$0xf]
        %v2086 = vld [vmem:[#allocation7 + $0x358] sm:$0xf]
        %v2087 = vld [vmem:[#allocation7 + $0x35c] sm:$0xf]
        %v2088 = vld [vmem:[#allocation7 + $0x360] sm:$0xf]
        %v2089 = vld [vmem:[#allocation7 + $0x364] sm:$0xf]
        %v2090 = vld [vmem:[#allocation7 + $0x368] sm:$0xf]
        %v2091 = vld [vmem:[#allocation7 + $0x36c] sm:$0xf]
        %v2092 = vld [vmem:[#allocation7 + $0x370] sm:$0xf]
        %v2093 = vld [vmem:[#allocation7 + $0x374] sm:$0xf]
        %v2094 = vld [vmem:[#allocation7 + $0x378] sm:$0xf]
        %v2095 = vld [vmem:[#allocation7 + $0x37c] sm:$0xf]
        %v2096 = vld [vmem:[#allocation7 + $0x380] sm:$0xf]
        %v2097 = vld [vmem:[#allocation7 + $0x384] sm:$0xf]
        %v2098 = vld [vmem:[#allocation7 + $0x388] sm:$0xf]
        %v2099 = vld [vmem:[#allocation7 + $0x38c] sm:$0xf]
        %v2100 = vld [vmem:[#allocation7 + $0x390] sm:$0xf]
        %v2101 = vld [vmem:[#allocation7 + $0x394] sm:$0xf]
        %v2102 = vld [vmem:[#allocation7 + $0x398] sm:$0xf]
        %v2103 = vld [vmem:[#allocation7 + $0x39c] sm:$0xf]
        %v2104 = vld [vmem:[#allocation7 + $0x3a0] sm:$0xf]
        %v2105 = vld [vmem:[#allocation7 + $0x3a4] sm:$0xf]
        %v2106 = vld [vmem:[#allocation7 + $0x3a8] sm:$0xf]
        %v2107 = vld [vmem:[#allocation7 + $0x3ac] sm:$0xf]
        %v2108 = vld [vmem:[#allocation7 + $0x3b0] sm:$0xf]
        %v2109 = vld [vmem:[#allocation7 + $0x3b4] sm:$0xf]
        %v2110 = vld [vmem:[#allocation7 + $0x3b8] sm:$0xf]
        %v2111 = vld [vmem:[#allocation7 + $0x3bc] sm:$0xf]
        %v2112 = vld [vmem:[#allocation7 + $0x3c0] sm:$0xf]
        %v2113 = vld [vmem:[#allocation7 + $0x3c4] sm:$0xf]
        %v2114 = vld [vmem:[#allocation7 + $0x3c8] sm:$0xf]
        %v2115 = vld [vmem:[#allocation7 + $0x3cc] sm:$0xf]
        %v2116 = vld [vmem:[#allocation7 + $0x3d0] sm:$0xf]
        %v2117 = vld [vmem:[#allocation7 + $0x3d4] sm:$0xf]
        %v2118 = vld [vmem:[#allocation7 + $0x3d8] sm:$0xf]
        %v2119 = vld [vmem:[#allocation7 + $0x3dc] sm:$0xf]
        %v2120 = vld [vmem:[#allocation7 + $0x3e0] sm:$0xf]
        %v2121 = vld [vmem:[#allocation7 + $0x3e4] sm:$0xf]
        %v2122 = vld [vmem:[#allocation7 + $0x3e8] sm:$0xf]
        %v2123 = vld [vmem:[#allocation7 + $0x3ec] sm:$0xf]
        %v2124 = vld [vmem:[#allocation7 + $0x3f0] sm:$0xf]
        %v2125 = vld [vmem:[#allocation7 + $0x3f4] sm:$0xf]
        %v2126 = vld [vmem:[#allocation7 + $0x3f8] sm:$0xf]
        %v2127 = vld [vmem:[#allocation7 + $0x3fc] sm:$0xf]
        %v2128 = vld [vmem:[%s12] sm:$0x1]
        %v2130 = vperm.slane %v2128, 0
        %v2388 = vunpack.c.l.b16 %v1872
        %v2389 = vunpack.c.l.b16 %v1873
        %v2390 = vunpack.c.l.b16 %v1874
        %v2391 = vunpack.c.l.b16 %v1875
        %v2392 = vunpack.c.l.b16 %v1876
        %v2393 = vunpack.c.l.b16 %v1877
        %v2394 = vunpack.c.l.b16 %v1878
        %v2395 = vunpack.c.l.b16 %v1879
        %v2396 = vunpack.c.l.b16 %v1880
        %v2397 = vunpack.c.l.b16 %v1881
        %v2398 = vunpack.c.l.b16 %v1882
        %v2399 = vunpack.c.l.b16 %v1883
        %v2400 = vunpack.c.l.b16 %v1884
        %v2401 = vunpack.c.l.b16 %v1885
        %v2402 = vunpack.c.l.b16 %v1886
        %v2403 = vunpack.c.l.b16 %v1887
        %v2404 = vunpack.c.l.b16 %v1888
        %v2405 = vunpack.c.l.b16 %v1889
        %v2406 = vunpack.c.l.b16 %v1890
        %v2407 = vunpack.c.l.b16 %v1891
        %v2408 = vunpack.c.l.b16 %v1892
        %v2409 = vunpack.c.l.b16 %v1893
        %v2410 = vunpack.c.l.b16 %v1894
        %v2411 = vunpack.c.l.b16 %v1895
        %v2412 = vunpack.c.l.b16 %v1896
        %v2413 = vunpack.c.l.b16 %v1897
        %v2414 = vunpack.c.l.b16 %v1898
        %v2415 = vunpack.c.l.b16 %v1899
        %v2416 = vunpack.c.l.b16 %v1900
        %v2417 = vunpack.c.l.b16 %v1901
        %v2418 = vunpack.c.l.b16 %v1902
        %v2419 = vunpack.c.l.b16 %v1903
        %v2420 = vunpack.c.l.b16 %v1904
        %v2421 = vunpack.c.l.b16 %v1905
        %v2422 = vunpack.c.l.b16 %v1906
        %v2423 = vunpack.c.l.b16 %v1907
        %v2424 = vunpack.c.l.b16 %v1908
        %v2425 = vunpack.c.l.b16 %v1909
        %v2426 = vunpack.c.l.b16 %v1910
        %v2427 = vunpack.c.l.b16 %v1911
        %v2428 = vunpack.c.l.b16 %v1912
        %v2429 = vunpack.c.l.b16 %v1913
        %v2430 = vunpack.c.l.b16 %v1914
        %v2431 = vunpack.c.l.b16 %v1915
        %v2432 = vunpack.c.l.b16 %v1916
        %v2433 = vunpack.c.l.b16 %v1917
        %v2434 = vunpack.c.l.b16 %v1918
        %v2435 = vunpack.c.l.b16 %v1919
        %v2436 = vunpack.c.l.b16 %v1920
        %v2437 = vunpack.c.l.b16 %v1921
        %v2438 = vunpack.c.l.b16 %v1922
        %v2439 = vunpack.c.l.b16 %v1923
        %v2440 = vunpack.c.l.b16 %v1924
        %v2441 = vunpack.c.l.b16 %v1925
        %v2442 = vunpack.c.l.b16 %v1926
        %v2443 = vunpack.c.l.b16 %v1927
        %v2444 = vunpack.c.l.b16 %v1928
        %v2445 = vunpack.c.l.b16 %v1929
        %v2446 = vunpack.c.l.b16 %v1930
        %v2447 = vunpack.c.l.b16 %v1931
        %v2448 = vunpack.c.l.b16 %v1932
        %v2449 = vunpack.c.l.b16 %v1933
        %v2450 = vunpack.c.l.b16 %v1934
        %v2451 = vunpack.c.l.b16 %v1935
        %v2452 = vunpack.c.l.b16 %v1936
        %v2453 = vunpack.c.l.b16 %v1937
        %v2454 = vunpack.c.l.b16 %v1938
        %v2455 = vunpack.c.l.b16 %v1939
        %v2456 = vunpack.c.l.b16 %v1940
        %v2457 = vunpack.c.l.b16 %v1941
        %v2458 = vunpack.c.l.b16 %v1942
        %v2459 = vunpack.c.l.b16 %v1943
        %v2460 = vunpack.c.l.b16 %v1944
        %v2461 = vunpack.c.l.b16 %v1945
        %v2462 = vunpack.c.l.b16 %v1946
        %v2463 = vunpack.c.l.b16 %v1947
        %v2464 = vunpack.c.l.b16 %v1948
        %v2465 = vunpack.c.l.b16 %v1949
        %v2466 = vunpack.c.l.b16 %v1950
        %v2467 = vunpack.c.l.b16 %v1951
        %v2468 = vunpack.c.l.b16 %v1952
        %v2469 = vunpack.c.l.b16 %v1953
        %v2470 = vunpack.c.l.b16 %v1954
        %v2471 = vunpack.c.l.b16 %v1955
        %v2472 = vunpack.c.l.b16 %v1956
        %v2473 = vunpack.c.l.b16 %v1957
        %v2474 = vunpack.c.l.b16 %v1958
        %v2475 = vunpack.c.l.b16 %v1959
        %v2476 = vunpack.c.l.b16 %v1960
        %v2477 = vunpack.c.l.b16 %v1961
        %v2478 = vunpack.c.l.b16 %v1962
        %v2479 = vunpack.c.l.b16 %v1963
        %v2480 = vunpack.c.l.b16 %v1964
        %v2481 = vunpack.c.l.b16 %v1965
        %v2482 = vunpack.c.l.b16 %v1966
        %v2483 = vunpack.c.l.b16 %v1967
        %v2484 = vunpack.c.l.b16 %v1968
        %v2485 = vunpack.c.l.b16 %v1969
        %v2486 = vunpack.c.l.b16 %v1970
        %v2487 = vunpack.c.l.b16 %v1971
        %v2488 = vunpack.c.l.b16 %v1972
        %v2489 = vunpack.c.l.b16 %v1973
        %v2490 = vunpack.c.l.b16 %v1974
        %v2491 = vunpack.c.l.b16 %v1975
        %v2492 = vunpack.c.l.b16 %v1976
        %v2493 = vunpack.c.l.b16 %v1977
        %v2494 = vunpack.c.l.b16 %v1978
        %v2495 = vunpack.c.l.b16 %v1979
        %v2496 = vunpack.c.l.b16 %v1980
        %v2497 = vunpack.c.l.b16 %v1981
        %v2498 = vunpack.c.l.b16 %v1982
        %v2499 = vunpack.c.l.b16 %v1983
        %v2500 = vunpack.c.l.b16 %v1984
        %v2501 = vunpack.c.l.b16 %v1985
        %v2502 = vunpack.c.l.b16 %v1986
        %v2503 = vunpack.c.l.b16 %v1987
        %v2504 = vunpack.c.l.b16 %v1988
        %v2505 = vunpack.c.l.b16 %v1989
        %v2506 = vunpack.c.l.b16 %v1990
        %v2507 = vunpack.c.l.b16 %v1991
        %v2508 = vunpack.c.l.b16 %v1992
        %v2509 = vunpack.c.l.b16 %v1993
        %v2510 = vunpack.c.l.b16 %v1994
        %v2511 = vunpack.c.l.b16 %v1995
        %v2512 = vunpack.c.l.b16 %v1996
        %v2513 = vunpack.c.l.b16 %v1997
        %v2514 = vunpack.c.l.b16 %v1998
        %v2515 = vunpack.c.l.b16 %v1999
        %v2516 = vunpack.c.l.b16 %v2000
        %v2517 = vunpack.c.l.b16 %v2001
        %v2518 = vunpack.c.l.b16 %v2002
        %v2519 = vunpack.c.l.b16 %v2003
        %v2520 = vunpack.c.l.b16 %v2004
        %v2521 = vunpack.c.l.b16 %v2005
        %v2522 = vunpack.c.l.b16 %v2006
        %v2523 = vunpack.c.l.b16 %v2007
        %v2524 = vunpack.c.l.b16 %v2008
        %v2525 = vunpack.c.l.b16 %v2009
        %v2526 = vunpack.c.l.b16 %v2010
        %v2527 = vunpack.c.l.b16 %v2011
        %v2528 = vunpack.c.l.b16 %v2012
        %v2529 = vunpack.c.l.b16 %v2013
        %v2530 = vunpack.c.l.b16 %v2014
        %v2531 = vunpack.c.l.b16 %v2015
        %v2532 = vunpack.c.l.b16 %v2016
        %v2533 = vunpack.c.l.b16 %v2017
        %v2534 = vunpack.c.l.b16 %v2018
        %v2535 = vunpack.c.l.b16 %v2019
        %v2536 = vunpack.c.l.b16 %v2020
        %v2537 = vunpack.c.l.b16 %v2021
        %v2538 = vunpack.c.l.b16 %v2022
        %v2539 = vunpack.c.l.b16 %v2023
        %v2540 = vunpack.c.l.b16 %v2024
        %v2541 = vunpack.c.l.b16 %v2025
        %v2542 = vunpack.c.l.b16 %v2026
        %v2543 = vunpack.c.l.b16 %v2027
        %v2544 = vunpack.c.l.b16 %v2028
        %v2545 = vunpack.c.l.b16 %v2029
        %v2546 = vunpack.c.l.b16 %v2030
        %v2547 = vunpack.c.l.b16 %v2031
        %v2548 = vunpack.c.l.b16 %v2032
        %v2549 = vunpack.c.l.b16 %v2033
        %v2550 = vunpack.c.l.b16 %v2034
        %v2551 = vunpack.c.l.b16 %v2035
        %v2552 = vunpack.c.l.b16 %v2036
        %v2553 = vunpack.c.l.b16 %v2037
        %v2554 = vunpack.c.l.b16 %v2038
        %v2555 = vunpack.c.l.b16 %v2039
        %v2556 = vunpack.c.l.b16 %v2040
        %v2557 = vunpack.c.l.b16 %v2041
        %v2558 = vunpack.c.l.b16 %v2042
        %v2559 = vunpack.c.l.b16 %v2043
        %v2560 = vunpack.c.l.b16 %v2044
        %v2561 = vunpack.c.l.b16 %v2045
        %v2562 = vunpack.c.l.b16 %v2046
        %v2563 = vunpack.c.l.b16 %v2047
        %v2564 = vunpack.c.l.b16 %v2048
        %v2565 = vunpack.c.l.b16 %v2049
        %v2566 = vunpack.c.l.b16 %v2050
        %v2567 = vunpack.c.l.b16 %v2051
        %v2568 = vunpack.c.l.b16 %v2052
        %v2569 = vunpack.c.l.b16 %v2053
        %v2570 = vunpack.c.l.b16 %v2054
        %v2571 = vunpack.c.l.b16 %v2055
        %v2572 = vunpack.c.l.b16 %v2056
        %v2573 = vunpack.c.l.b16 %v2057
        %v2574 = vunpack.c.l.b16 %v2058
        %v2575 = vunpack.c.l.b16 %v2059
        %v2576 = vunpack.c.l.b16 %v2060
        %v2577 = vunpack.c.l.b16 %v2061
        %v2578 = vunpack.c.l.b16 %v2062
        %v2579 = vunpack.c.l.b16 %v2063
        %v2580 = vunpack.c.l.b16 %v2064
        %v2581 = vunpack.c.l.b16 %v2065
        %v2582 = vunpack.c.l.b16 %v2066
        %v2583 = vunpack.c.l.b16 %v2067
        %v2584 = vunpack.c.l.b16 %v2068
        %v2585 = vunpack.c.l.b16 %v2069
        %v2586 = vunpack.c.l.b16 %v2070
        %v2587 = vunpack.c.l.b16 %v2071
        %v2588 = vunpack.c.l.b16 %v2072
        %v2589 = vunpack.c.l.b16 %v2073
        %v2590 = vunpack.c.l.b16 %v2074
        %v2591 = vunpack.c.l.b16 %v2075
        %v2592 = vunpack.c.l.b16 %v2076
        %v2593 = vunpack.c.l.b16 %v2077
        %v2594 = vunpack.c.l.b16 %v2078
        %v2595 = vunpack.c.l.b16 %v2079
        %v2596 = vunpack.c.l.b16 %v2080
        %v2597 = vunpack.c.l.b16 %v2081
        %v2598 = vunpack.c.l.b16 %v2082
        %v2599 = vunpack.c.l.b16 %v2083
        %v2600 = vunpack.c.l.b16 %v2084
        %v2601 = vunpack.c.l.b16 %v2085
        %v2602 = vunpack.c.l.b16 %v2086
        %v2603 = vunpack.c.l.b16 %v2087
        %v2604 = vunpack.c.l.b16 %v2088
        %v2605 = vunpack.c.l.b16 %v2089
        %v2606 = vunpack.c.l.b16 %v2090
        %v2607 = vunpack.c.l.b16 %v2091
        %v2608 = vunpack.c.l.b16 %v2092
        %v2609 = vunpack.c.l.b16 %v2093
        %v2610 = vunpack.c.l.b16 %v2094
        %v2611 = vunpack.c.l.b16 %v2095
        %v2612 = vunpack.c.l.b16 %v2096
        %v2613 = vunpack.c.l.b16 %v2097
        %v2614 = vunpack.c.l.b16 %v2098
        %v2615 = vunpack.c.l.b16 %v2099
        %v2616 = vunpack.c.l.b16 %v2100
        %v2617 = vunpack.c.l.b16 %v2101
        %v2618 = vunpack.c.l.b16 %v2102
        %v2619 = vunpack.c.l.b16 %v2103
        %v2620 = vunpack.c.l.b16 %v2104
        %v2621 = vunpack.c.l.b16 %v2105
        %v2622 = vunpack.c.l.b16 %v2106
        %v2623 = vunpack.c.l.b16 %v2107
        %v2624 = vunpack.c.l.b16 %v2108
        %v2625 = vunpack.c.l.b16 %v2109
        %v2626 = vunpack.c.l.b16 %v2110
        %v2627 = vunpack.c.l.b16 %v2111
        %v2628 = vunpack.c.l.b16 %v2112
        %v2629 = vunpack.c.l.b16 %v2113
        %v2630 = vunpack.c.l.b16 %v2114
        %v2631 = vunpack.c.l.b16 %v2115
        %v2632 = vunpack.c.l.b16 %v2116
        %v2633 = vunpack.c.l.b16 %v2117
        %v2634 = vunpack.c.l.b16 %v2118
        %v2635 = vunpack.c.l.b16 %v2119
        %v2636 = vunpack.c.l.b16 %v2120
        %v2637 = vunpack.c.l.b16 %v2121
        %v2638 = vunpack.c.l.b16 %v2122
        %v2639 = vunpack.c.l.b16 %v2123
        %v2640 = vunpack.c.l.b16 %v2124
        %v2641 = vunpack.c.l.b16 %v2125
        %v2642 = vunpack.c.l.b16 %v2126
        %v2643 = vunpack.c.l.b16 %v2127
        %v2644 = vpack.c.b16 %v2389, %v2388
        %v2645 = vpack.c.b16 %v2391, %v2390
        %v2646 = vpack.c.b16 %v2393, %v2392
        %v2647 = vpack.c.b16 %v2395, %v2394
        %v2648 = vpack.c.b16 %v2397, %v2396
        %v2649 = vpack.c.b16 %v2399, %v2398
        %v2650 = vpack.c.b16 %v2401, %v2400
        %v2651 = vpack.c.b16 %v2403, %v2402
        %v2652 = vpack.c.b16 %v2405, %v2404
        %v2653 = vpack.c.b16 %v2407, %v2406
        %v2654 = vpack.c.b16 %v2409, %v2408
        %v2655 = vpack.c.b16 %v2411, %v2410
        %v2656 = vpack.c.b16 %v2413, %v2412
        %v2657 = vpack.c.b16 %v2415, %v2414
        %v2658 = vpack.c.b16 %v2417, %v2416
        %v2659 = vpack.c.b16 %v2419, %v2418
        %v2660 = vpack.c.b16 %v2421, %v2420
        %v2661 = vpack.c.b16 %v2423, %v2422
        %v2662 = vpack.c.b16 %v2425, %v2424
        %v2663 = vpack.c.b16 %v2427, %v2426
        %v2664 = vpack.c.b16 %v2429, %v2428
        %v2665 = vpack.c.b16 %v2431, %v2430
        %v2666 = vpack.c.b16 %v2433, %v2432
        %v2667 = vpack.c.b16 %v2435, %v2434
        %v2668 = vpack.c.b16 %v2437, %v2436
        %v2669 = vpack.c.b16 %v2439, %v2438
        %v2670 = vpack.c.b16 %v2441, %v2440
        %v2671 = vpack.c.b16 %v2443, %v2442
        %v2672 = vpack.c.b16 %v2445, %v2444
        %v2673 = vpack.c.b16 %v2447, %v2446
        %v2674 = vpack.c.b16 %v2449, %v2448
        %v2675 = vpack.c.b16 %v2451, %v2450
        %v2676 = vpack.c.b16 %v2453, %v2452
        %v2677 = vpack.c.b16 %v2455, %v2454
        %v2678 = vpack.c.b16 %v2457, %v2456
        %v2679 = vpack.c.b16 %v2459, %v2458
        %v2680 = vpack.c.b16 %v2461, %v2460
        %v2681 = vpack.c.b16 %v2463, %v2462
        %v2682 = vpack.c.b16 %v2465, %v2464
        %v2683 = vpack.c.b16 %v2467, %v2466
        %v2684 = vpack.c.b16 %v2469, %v2468
        %v2685 = vpack.c.b16 %v2471, %v2470
        %v2686 = vpack.c.b16 %v2473, %v2472
        %v2687 = vpack.c.b16 %v2475, %v2474
        %v2688 = vpack.c.b16 %v2477, %v2476
        %v2689 = vpack.c.b16 %v2479, %v2478
        %v2690 = vpack.c.b16 %v2481, %v2480
        %v2691 = vpack.c.b16 %v2483, %v2482
        %v2692 = vpack.c.b16 %v2485, %v2484
        %v2693 = vpack.c.b16 %v2487, %v2486
        %v2694 = vpack.c.b16 %v2489, %v2488
        %v2695 = vpack.c.b16 %v2491, %v2490
        %v2696 = vpack.c.b16 %v2493, %v2492
        %v2697 = vpack.c.b16 %v2495, %v2494
        %v2698 = vpack.c.b16 %v2497, %v2496
        %v2699 = vpack.c.b16 %v2499, %v2498
        %v2700 = vpack.c.b16 %v2501, %v2500
        %v2701 = vpack.c.b16 %v2503, %v2502
        %v2702 = vpack.c.b16 %v2505, %v2504
        %v2703 = vpack.c.b16 %v2507, %v2506
        %v2704 = vpack.c.b16 %v2509, %v2508
        %v2705 = vpack.c.b16 %v2511, %v2510
        %v2706 = vpack.c.b16 %v2513, %v2512
        %v2707 = vpack.c.b16 %v2515, %v2514
        %v2708 = vpack.c.b16 %v2517, %v2516
        %v2709 = vpack.c.b16 %v2519, %v2518
        %v2710 = vpack.c.b16 %v2521, %v2520
        %v2711 = vpack.c.b16 %v2523, %v2522
        %v2712 = vpack.c.b16 %v2525, %v2524
        %v2713 = vpack.c.b16 %v2527, %v2526
        %v2714 = vpack.c.b16 %v2529, %v2528
        %v2715 = vpack.c.b16 %v2531, %v2530
        %v2716 = vpack.c.b16 %v2533, %v2532
        %v2717 = vpack.c.b16 %v2535, %v2534
        %v2718 = vpack.c.b16 %v2537, %v2536
        %v2719 = vpack.c.b16 %v2539, %v2538
        %v2720 = vpack.c.b16 %v2541, %v2540
        %v2721 = vpack.c.b16 %v2543, %v2542
        %v2722 = vpack.c.b16 %v2545, %v2544
        %v2723 = vpack.c.b16 %v2547, %v2546
        %v2724 = vpack.c.b16 %v2549, %v2548
        %v2725 = vpack.c.b16 %v2551, %v2550
        %v2726 = vpack.c.b16 %v2553, %v2552
        %v2727 = vpack.c.b16 %v2555, %v2554
        %v2728 = vpack.c.b16 %v2557, %v2556
        %v2729 = vpack.c.b16 %v2559, %v2558
        %v2730 = vpack.c.b16 %v2561, %v2560
        %v2731 = vpack.c.b16 %v2563, %v2562
        %v2732 = vpack.c.b16 %v2565, %v2564
        %v2733 = vpack.c.b16 %v2567, %v2566
        %v2734 = vpack.c.b16 %v2569, %v2568
        %v2735 = vpack.c.b16 %v2571, %v2570
        %v2736 = vpack.c.b16 %v2573, %v2572
        %v2737 = vpack.c.b16 %v2575, %v2574
        %v2738 = vpack.c.b16 %v2577, %v2576
        %v2739 = vpack.c.b16 %v2579, %v2578
        %v2740 = vpack.c.b16 %v2581, %v2580
        %v2741 = vpack.c.b16 %v2583, %v2582
        %v2742 = vpack.c.b16 %v2585, %v2584
        %v2743 = vpack.c.b16 %v2587, %v2586
        %v2744 = vpack.c.b16 %v2589, %v2588
        %v2745 = vpack.c.b16 %v2591, %v2590
        %v2746 = vpack.c.b16 %v2593, %v2592
        %v2747 = vpack.c.b16 %v2595, %v2594
        %v2748 = vpack.c.b16 %v2597, %v2596
        %v2749 = vpack.c.b16 %v2599, %v2598
        %v2750 = vpack.c.b16 %v2601, %v2600
        %v2751 = vpack.c.b16 %v2603, %v2602
        %v2752 = vpack.c.b16 %v2605, %v2604
        %v2753 = vpack.c.b16 %v2607, %v2606
        %v2754 = vpack.c.b16 %v2609, %v2608
        %v2755 = vpack.c.b16 %v2611, %v2610
        %v2756 = vpack.c.b16 %v2613, %v2612
        %v2757 = vpack.c.b16 %v2615, %v2614
        %v2758 = vpack.c.b16 %v2617, %v2616
        %v2759 = vpack.c.b16 %v2619, %v2618
        %v2760 = vpack.c.b16 %v2621, %v2620
        %v2761 = vpack.c.b16 %v2623, %v2622
        %v2762 = vpack.c.b16 %v2625, %v2624
        %v2763 = vpack.c.b16 %v2627, %v2626
        %v2764 = vpack.c.b16 %v2629, %v2628
        %v2765 = vpack.c.b16 %v2631, %v2630
        %v2766 = vpack.c.b16 %v2633, %v2632
        %v2767 = vpack.c.b16 %v2635, %v2634
        %v2768 = vpack.c.b16 %v2637, %v2636
        %v2769 = vpack.c.b16 %v2639, %v2638
        %v2770 = vpack.c.b16 %v2641, %v2640
        %v2771 = vpack.c.b16 %v2643, %v2642
        %2900 = vmatpush.bf16.msra.mxu0 %v2651
        %2901 = vmatpush.bf16.msra.mxu0 %v2650
        %2902 = vmatpush.bf16.msra.mxu0 %v2649
        %2903 = vmatpush.bf16.msra.mxu0 %v2648
        %2904 = vmatpush.bf16.msra.mxu0 %v2647
        %2905 = vmatpush.bf16.msra.mxu0 %v2646
        %2906 = vmatpush.bf16.msra.mxu0 %v2645
        %2907 = vmatpush.bf16.msra.mxu0 %v2644
        %2908 = vmatmul.bf16.gmra.mxu0 %v1856
        %v2909 = vpop.f32.mrf.mxu0
        %v2910 = vadd.f32 %v2130, %v2909
        %v2911 = vpop.f32.mrf.mxu0
        %2912 = vdwg.mxu0
        %2913 = vmatpush.bf16.msra.mxu0 %v2659
        %2914 = vmatpush.bf16.msra.mxu0 %v2658
        %2915 = vmatpush.bf16.msra.mxu0 %v2657
        %2916 = vmatpush.bf16.msra.mxu0 %v2656
        %2917 = vmatpush.bf16.msra.mxu0 %v2655
        %2918 = vmatpush.bf16.msra.mxu0 %v2654
        %2919 = vmatpush.bf16.msra.mxu0 %v2653
        %2920 = vmatpush.bf16.msra.mxu0 %v2652
        %2921 = vmatmul.bf16.gmra.mxu0 %v1857
        %v2922 = vpop.f32.mrf.mxu0
        %v2923 = vadd.f32 %v2910, %v2922
        %v2924 = vpop.f32.mrf.mxu0
        %2925 = vdwg.mxu0
        %2926 = vmatpush.bf16.msra.mxu0 %v2667
        %2927 = vmatpush.bf16.msra.mxu0 %v2666
        %2928 = vmatpush.bf16.msra.mxu0 %v2665
        %2929 = vmatpush.bf16.msra.mxu0 %v2664
        %2930 = vmatpush.bf16.msra.mxu0 %v2663
        %2931 = vmatpush.bf16.msra.mxu0 %v2662
        %2932 = vmatpush.bf16.msra.mxu0 %v2661
        %2933 = vmatpush.bf16.msra.mxu0 %v2660
        %2934 = vmatmul.bf16.gmra.mxu0 %v1858
        %v2935 = vpop.f32.mrf.mxu0
        %v2936 = vadd.f32 %v2923, %v2935
        %v2937 = vpop.f32.mrf.mxu0
        %2938 = vdwg.mxu0
        %2939 = vmatpush.bf16.msra.mxu0 %v2675
        %2940 = vmatpush.bf16.msra.mxu0 %v2674
        %2941 = vmatpush.bf16.msra.mxu0 %v2673
        %2942 = vmatpush.bf16.msra.mxu0 %v2672
        %2943 = vmatpush.bf16.msra.mxu0 %v2671
        %2944 = vmatpush.bf16.msra.mxu0 %v2670
        %2945 = vmatpush.bf16.msra.mxu0 %v2669
        %2946 = vmatpush.bf16.msra.mxu0 %v2668
        %2947 = vmatmul.bf16.gmra.mxu0 %v1859
        %v2948 = vpop.f32.mrf.mxu0
        %v2949 = vadd.f32 %v2936, %v2948
        %v2950 = vpop.f32.mrf.mxu0
        %2951 = vdwg.mxu0
        %2952 = vmatpush.bf16.msra.mxu0 %v2683
        %2953 = vmatpush.bf16.msra.mxu0 %v2682
        %2954 = vmatpush.bf16.msra.mxu0 %v2681
        %2955 = vmatpush.bf16.msra.mxu0 %v2680
        %2956 = vmatpush.bf16.msra.mxu0 %v2679
        %2957 = vmatpush.bf16.msra.mxu0 %v2678
        %2958 = vmatpush.bf16.msra.mxu0 %v2677
        %2959 = vmatpush.bf16.msra.mxu0 %v2676
        %2960 = vmatmul.bf16.gmra.mxu0 %v1860
        %v2961 = vpop.f32.mrf.mxu0
        %v2962 = vadd.f32 %v2949, %v2961
        %v2963 = vpop.f32.mrf.mxu0
        %2964 = vdwg.mxu0
        %2965 = vmatpush.bf16.msra.mxu0 %v2691
        %2966 = vmatpush.bf16.msra.mxu0 %v2690
        %2967 = vmatpush.bf16.msra.mxu0 %v2689
        %2968 = vmatpush.bf16.msra.mxu0 %v2688
        %2969 = vmatpush.bf16.msra.mxu0 %v2687
        %2970 = vmatpush.bf16.msra.mxu0 %v2686
        %2971 = vmatpush.bf16.msra.mxu0 %v2685
        %2972 = vmatpush.bf16.msra.mxu0 %v2684
        %2973 = vmatmul.bf16.gmra.mxu0 %v1861
        %v2974 = vpop.f32.mrf.mxu0
        %v2975 = vadd.f32 %v2962, %v2974
        %v2976 = vpop.f32.mrf.mxu0
        %2977 = vdwg.mxu0
        %2978 = vmatpush.bf16.msra.mxu0 %v2699
        %2979 = vmatpush.bf16.msra.mxu0 %v2698
        %2980 = vmatpush.bf16.msra.mxu0 %v2697
        %2981 = vmatpush.bf16.msra.mxu0 %v2696
        %2982 = vmatpush.bf16.msra.mxu0 %v2695
        %2983 = vmatpush.bf16.msra.mxu0 %v2694
        %2984 = vmatpush.bf16.msra.mxu0 %v2693
        %2985 = vmatpush.bf16.msra.mxu0 %v2692
        %2986 = vmatmul.bf16.gmra.mxu0 %v1862
        %v2987 = vpop.f32.mrf.mxu0
        %v2988 = vadd.f32 %v2975, %v2987
        %v2989 = vpop.f32.mrf.mxu0
        %2990 = vdwg.mxu0
        %2991 = vmatpush.bf16.msra.mxu0 %v2707
        %2992 = vmatpush.bf16.msra.mxu0 %v2706
        %2993 = vmatpush.bf16.msra.mxu0 %v2705
        %2994 = vmatpush.bf16.msra.mxu0 %v2704
        %2995 = vmatpush.bf16.msra.mxu0 %v2703
        %2996 = vmatpush.bf16.msra.mxu0 %v2702
        %2997 = vmatpush.bf16.msra.mxu0 %v2701
        %2998 = vmatpush.bf16.msra.mxu0 %v2700
        %2999 = vmatmul.bf16.gmra.mxu0 %v1863
        %v3000 = vpop.f32.mrf.mxu0
        %v3001 = vadd.f32 %v2988, %v3000
        %v3002 = vpop.f32.mrf.mxu0
        %3003 = vdwg.mxu0
        %3004 = vmatpush.bf16.msra.mxu0 %v2715
        %3005 = vmatpush.bf16.msra.mxu0 %v2714
        %3006 = vmatpush.bf16.msra.mxu0 %v2713
        %3007 = vmatpush.bf16.msra.mxu0 %v2712
        %3008 = vmatpush.bf16.msra.mxu0 %v2711
        %3009 = vmatpush.bf16.msra.mxu0 %v2710
        %3010 = vmatpush.bf16.msra.mxu0 %v2709
        %3011 = vmatpush.bf16.msra.mxu0 %v2708
        %3012 = vmatmul.bf16.gmra.mxu0 %v1864
        %v3013 = vpop.f32.mrf.mxu0
        %v3014 = vadd.f32 %v3001, %v3013
        %v3015 = vpop.f32.mrf.mxu0
        %3016 = vdwg.mxu0
        %3017 = vmatpush.bf16.msra.mxu0 %v2723
        %3018 = vmatpush.bf16.msra.mxu0 %v2722
        %3019 = vmatpush.bf16.msra.mxu0 %v2721
        %3020 = vmatpush.bf16.msra.mxu0 %v2720
        %3021 = vmatpush.bf16.msra.mxu0 %v2719
        %3022 = vmatpush.bf16.msra.mxu0 %v2718
        %3023 = vmatpush.bf16.msra.mxu0 %v2717
        %3024 = vmatpush.bf16.msra.mxu0 %v2716
        %3025 = vmatmul.bf16.gmra.mxu0 %v1865
        %v3026 = vpop.f32.mrf.mxu0
        %v3027 = vadd.f32 %v3014, %v3026
        %v3028 = vpop.f32.mrf.mxu0
        %3029 = vdwg.mxu0
        %3030 = vmatpush.bf16.msra.mxu0 %v2731
        %3031 = vmatpush.bf16.msra.mxu0 %v2730
        %3032 = vmatpush.bf16.msra.mxu0 %v2729
        %3033 = vmatpush.bf16.msra.mxu0 %v2728
        %3034 = vmatpush.bf16.msra.mxu0 %v2727
        %3035 = vmatpush.bf16.msra.mxu0 %v2726
        %3036 = vmatpush.bf16.msra.mxu0 %v2725
        %3037 = vmatpush.bf16.msra.mxu0 %v2724
        %3038 = vmatmul.bf16.gmra.mxu0 %v1866
        %v3039 = vpop.f32.mrf.mxu0
        %v3040 = vadd.f32 %v3027, %v3039
        %v3041 = vpop.f32.mrf.mxu0
        %3042 = vdwg.mxu0
        %3043 = vmatpush.bf16.msra.mxu0 %v2739
        %3044 = vmatpush.bf16.msra.mxu0 %v2738
        %3045 = vmatpush.bf16.msra.mxu0 %v2737
        %3046 = vmatpush.bf16.msra.mxu0 %v2736
        %3047 = vmatpush.bf16.msra.mxu0 %v2735
        %3048 = vmatpush.bf16.msra.mxu0 %v2734
        %3049 = vmatpush.bf16.msra.mxu0 %v2733
        %3050 = vmatpush.bf16.msra.mxu0 %v2732
        %3051 = vmatmul.bf16.gmra.mxu0 %v1867
        %v3052 = vpop.f32.mrf.mxu0
        %v3053 = vadd.f32 %v3040, %v3052
        %v3054 = vpop.f32.mrf.mxu0
        %3055 = vdwg.mxu0
        %3056 = vmatpush.bf16.msra.mxu0 %v2747
        %3057 = vmatpush.bf16.msra.mxu0 %v2746
        %3058 = vmatpush.bf16.msra.mxu0 %v2745
        %3059 = vmatpush.bf16.msra.mxu0 %v2744
        %3060 = vmatpush.bf16.msra.mxu0 %v2743
        %3061 = vmatpush.bf16.msra.mxu0 %v2742
        %3062 = vmatpush.bf16.msra.mxu0 %v2741
        %3063 = vmatpush.bf16.msra.mxu0 %v2740
        %3064 = vmatmul.bf16.gmra.mxu0 %v1868
        %v3065 = vpop.f32.mrf.mxu0
        %v3066 = vadd.f32 %v3053, %v3065
        %v3067 = vpop.f32.mrf.mxu0
        %3068 = vdwg.mxu0
        %3069 = vmatpush.bf16.msra.mxu0 %v2755
        %3070 = vmatpush.bf16.msra.mxu0 %v2754
        %3071 = vmatpush.bf16.msra.mxu0 %v2753
        %3072 = vmatpush.bf16.msra.mxu0 %v2752
        %3073 = vmatpush.bf16.msra.mxu0 %v2751
        %3074 = vmatpush.bf16.msra.mxu0 %v2750
        %3075 = vmatpush.bf16.msra.mxu0 %v2749
        %3076 = vmatpush.bf16.msra.mxu0 %v2748
        %3077 = vmatmul.bf16.gmra.mxu0 %v1869
        %v3078 = vpop.f32.mrf.mxu0
        %v3079 = vadd.f32 %v3066, %v3078
        %v3080 = vpop.f32.mrf.mxu0
        %3081 = vdwg.mxu0
        %3082 = vmatpush.bf16.msra.mxu0 %v2763
        %3083 = vmatpush.bf16.msra.mxu0 %v2762
        %3084 = vmatpush.bf16.msra.mxu0 %v2761
        %3085 = vmatpush.bf16.msra.mxu0 %v2760
        %3086 = vmatpush.bf16.msra.mxu0 %v2759
        %3087 = vmatpush.bf16.msra.mxu0 %v2758
        %3088 = vmatpush.bf16.msra.mxu0 %v2757
        %3089 = vmatpush.bf16.msra.mxu0 %v2756
        %3090 = vmatmul.bf16.gmra.mxu0 %v1870
        %v3091 = vpop.f32.mrf.mxu0
        %v3092 = vadd.f32 %v3079, %v3091
        %v3093 = vpop.f32.mrf.mxu0
        %3094 = vdwg.mxu0
        %3095 = vmatpush.bf16.msra.mxu0 %v2771
        %3096 = vmatpush.bf16.msra.mxu0 %v2770
        %3097 = vmatpush.bf16.msra.mxu0 %v2769
        %3098 = vmatpush.bf16.msra.mxu0 %v2768
        %3099 = vmatpush.bf16.msra.mxu0 %v2767
        %3100 = vmatpush.bf16.msra.mxu0 %v2766
        %3101 = vmatpush.bf16.msra.mxu0 %v2765
        %3102 = vmatpush.bf16.msra.mxu0 %v2764
        %3103 = vmatmul.bf16.gmra.mxu0 %v1871
        %v3104 = vpop.f32.mrf.mxu0
        %v3105 = vadd.f32 %v3092, %v3104
        %v3106 = vpop.f32.mrf.mxu0
        %3107 = vdwg.mxu0
        %v3108 = vadd.f32 %v826, %v3105
        %v3109 = vld [vmem:[%s7] sm:$0x1]
        %v3110 = vld [vmem:[%s8] sm:$0x1]
        %3111 = vadd.xlane.f32.xlu0 %v3108
        %v3112 = vpop.xlane.xlu0 %3111
        %v3113 = vmul.f32 %v3112, 0.14285715
        %v3114 = vsub.f32 %v3108, %v3113
        %v3115 = vmul.f32 %v3114, %v3114
        %v3116 = vsel %vm802, %v3115, 0.0
        %3117 = vadd.xlane.f32.xlu0 %v3116
        %v3118 = vpop.xlane.xlu0 %3117
        %v3119 = vmul.f32 %v3118, 0.14285715
        %v3120 = vadd.f32 %v3119, 1e-05
        %v3121 = vrsqrt.pop %v3120
        %v3122 = vmul.f32 %v3121, %v3120
        %v3123 = vmul.f32 %v3122, %v3121
        %v3124 = vmul.f32 0.5, %v3123
        %v3125 = vsub.f32 1.5, %v3124
        %v3126 = vmul.f32 %v3121, %v3125
        %vm3127 = vweird.f32 %v3120
        %vm3128 = vweird.f32 %v3121
        %vm3129 = vmor %vm3127, %vm3128
        %v3130 = vsel %vm3129, %v3121, %v3126
        %v3131 = vmul.f32 %v3114, %v3130
        %v3133 = vperm.slane %v3109, 0
        %v3135 = vmul.f32 %v3131, %v3133
        %v3137 = vperm.slane %v3110, 0
        %v3139 = vadd.f32 %v3135, %v3137
        %v3140 = vld [vmem:[#allocation9] sm:$0xff]
        %v3141 = vld [vmem:[#allocation9 + $0x8] sm:$0xff]
        %v3142 = vld [vmem:[#allocation9 + $0x10] sm:$0xff]
        %v3143 = vld [vmem:[#allocation9 + $0x18] sm:$0xff]
        %v3144 = vld [vmem:[#allocation9 + $0x20] sm:$0xff]
        %v3145 = vld [vmem:[#allocation9 + $0x28] sm:$0xff]
        %v3146 = vld [vmem:[#allocation9 + $0x30] sm:$0xff]
        %v3147 = vld [vmem:[#allocation9 + $0x38] sm:$0xff]
        %v3148 = vld [vmem:[#allocation9 + $0x40] sm:$0xff]
        %v3149 = vld [vmem:[#allocation9 + $0x48] sm:$0xff]
        %v3150 = vld [vmem:[#allocation9 + $0x50] sm:$0xff]
        %v3151 = vld [vmem:[#allocation9 + $0x58] sm:$0xff]
        %v3152 = vld [vmem:[#allocation9 + $0x60] sm:$0xff]
        %v3153 = vld [vmem:[#allocation9 + $0x68] sm:$0xff]
        %v3154 = vld [vmem:[#allocation9 + $0x70] sm:$0xff]
        %v3155 = vld [vmem:[#allocation9 + $0x78] sm:$0xff]
        %v3156 = vld [vmem:[%s14] sm:$0x1]
        %v3158 = vperm.slane %v3156, 0
        %3160 = vmatpush.msra.mxu0 %v3155
        %3161 = vmatpush.msra.mxu0 %v3154
        %3162 = vmatpush.msra.mxu0 %v3153
        %3163 = vmatpush.msra.mxu0 %v3152
        %3164 = vmatpush.msra.mxu0 %v3151
        %3165 = vmatpush.msra.mxu0 %v3150
        %3166 = vmatpush.msra.mxu0 %v3149
        %3167 = vmatpush.msra.mxu0 %v3148
        %3168 = vmatpush.msra.mxu0 %v3147
        %3169 = vmatpush.msra.mxu0 %v3146
        %3170 = vmatpush.msra.mxu0 %v3145
        %3171 = vmatpush.msra.mxu0 %v3144
        %3172 = vmatpush.msra.mxu0 %v3143
        %3173 = vmatpush.msra.mxu0 %v3142
        %3174 = vmatpush.msra.mxu0 %v3141
        %3175 = vmatpush.msra.mxu0 %v3140
        %3176 = vmatmul.f32.gmra.mxu0 %v3139
        %v3177 = vpop.f32.mrf.mxu0
        %v3178 = vadd.f32 %v3158, %v3177
        %3179 = vdwg.mxu0
        %3180 = vst [vmem:[%s572] sm:$0xff] %v3178
        %p3181 = scmp.lt.s32.totalorder %s29, 1
        %s3182 = scalar_select %p3181, %s29, 1
        %s3183 = smul.addr %s3182, 8
        %s3184 = scalar_lea.vmem %s15, %s3183
        // Predicated region
        $region101: #{transformer_forward.1} parent=79 // pred_check
          %p3185 = pneg %p367
        $region102: #{transformer_forward.1} parent=79 // pred_check_branch
          %3187 = sbr.rel (%p3185) target = $region104
        $region103: #{transformer_forward.1} parent=79 // pred_region
          _
        $region104: #{transformer_forward.1} parent=79 // pred_fallthru
          _
      $region80: #{transformer_forward.1} parent=5 // pred_fallthru
        _
      %p3188 = scmp.le.s32.totalorder 2, %s24
      // Predicated region
      $region105: #{transformer_forward.1} parent=5 // pred_check
        %p3189 = pneg %p3188
      $region106: #{transformer_forward.1} parent=5 // pred_check_branch
        %3191 = sbr.rel (%p3189) target = $region108
      $region107: #{transformer_forward.1} parent=5 // pred_region
        %s3192 = ssub.s32 %s24, 2
        // Predicated region
        $region109: #{transformer_forward.1} parent=107 // pred_check
          %p3193 = pneg %p373
        $region110: #{transformer_forward.1} parent=107 // pred_check_branch
          %3195 = sbr.rel (%p3193) target = $region112
        $region111: #{transformer_forward.1} parent=107 // pred_region
          %p3196 = scmp.lt.s32.totalorder %s30, 1
          %s3197 = scalar_select %p3196, %s30, 1
          %s3198 = smul.addr %s3197, 8
          %s3199 = scalar_lea.vmem %s15, %s3198
        $region112: #{transformer_forward.1} parent=107 // pred_fallthru
          _
      $region108: #{transformer_forward.1} parent=5 // pred_fallthru
        _
    $region6: #{transformer_forward.1} parent=1 // loop_footer
      %s28 = sadd.s32 1, %s24
    $region7: #{transformer_forward.1} parent=1 // loop_footer_branch
      %23 = sbr.rel target = $region3
    $region8: #{transformer_forward.1} parent=1 // loop_exit
      _
    %3200 = vsyncpa [#allocation3], 1
    %s3201 = scalar_lea.sflag [#allocation3], 1
    %3202 = vsyncpa %s3201, 1
    %3203 = vsyncpa [#allocation5], 1
    %3204 = vsyncpa [#allocation8], 1

</llo_original>
